<compile_context>
chip_gen: v7x
topology: tpu7x:2x2x1
jax: 0.10.0
libtpu: 0.0.40
codegen_flags: <defaults>
</compile_context>

<pallas_src>
import jax
import jax.numpy as jnp
from jax.experimental import pallas as pl
from jax.experimental.pallas import tpu as pltpu


def _cdiv(a, b):
    return (a + b - 1) // b


def _round_up(x, m):
    return _cdiv(x, m) * m


def _mm_bias_kernel_inplace(a_ref, x_ref, c_ref, o_ref):
    """f32 output: use the k-invariant output block itself as the accumulator."""
    k = pl.program_id(2)

    @pl.when(k == 0)
    def _():
        # Bias as accumulator init -- applied exactly once per (i, j) tile.
        o_ref[...] = c_ref[...].astype(o_ref.dtype)

    o_ref[...] += jnp.dot(
        a_ref[...], x_ref[...], preferred_element_type=jnp.float32
    )


def _mm_bias_kernel_acc(a_ref, x_ref, c_ref, o_ref, acc_ref):
    """Non-f32 output: keep a f32 scratch accumulator, cast in the epilogue."""
    k = pl.program_id(2)

    @pl.when(k == 0)
    def _():
        acc_ref[...] = jnp.zeros_like(acc_ref)

    acc_ref[...] += jnp.dot(
        a_ref[...], x_ref[...], preferred_element_type=jnp.float32
    )

    @pl.when(k == pl.num_programs(2) - 1)
    def _():
        o_ref[...] = (acc_ref[...] + c_ref[...].astype(jnp.float32)).astype(
            o_ref.dtype
        )


def matmul_bias(a, x1, c, *, tm=512, tn=512, tk=512):
    """out = a @ x1 + c  (tiled Pallas TPU kernel)."""
    M, K = a.shape
    K2, N = x1.shape
    assert K == K2, "inner dims must match"
    assert c.shape == (M, N), "bias must match the output shape"

    out_dtype = jnp.promote_types(jnp.promote_types(a.dtype, x1.dtype), c.dtype)

    # ---- Fast path: tiny problems (e.g. the module's 3x3) -> plain XLA. ----
    if M < 8 or N < 128 or K < 128:
        return (
            jnp.dot(a, x1, preferred_element_type=out_dtype) + c
        ).astype(out_dtype)

    # ---- Tile selection: clamp to the (8,128)-aligned problem. ----
    tm = min(tm, _round_up(M, 8))
    tn = min(tn, _round_up(N, 128))
    tk = min(tk, _round_up(K, 128))

    # v7x megacore: keep >= 2 blocks across the parallel (i, j) axes so both
    # TensorCores get work; split the larger parallel tile if the grid collapsed.
    if _cdiv(M, tm) * _cdiv(N, tn) < 2:
        if _round_up(N, 128) >= 2 * 128 and N >= M:
            tn = _round_up(_cdiv(N, 2), 128)
        elif _round_up(M, 8) >= 2 * 8:
            tm = _round_up(_cdiv(M, 2), 8)

    # ---- Pad only the reduction (K) dimension; M/N tails are handled by the
    #      masked partial output tiles (ceil-div grid). ----
    Kp = _round_up(K, tk)
    a_p = a if Kp == K else jnp.pad(a, ((0, 0), (0, Kp - K)))
    x_p = x1 if Kp == K else jnp.pad(x1, ((0, Kp - K), (0, 0)))

    grid = (_cdiv(M, tm), _cdiv(N, tn), Kp // tk)

    # ---- Kernel / scratch selection based on output dtype. ----
    if out_dtype == jnp.float32:
        kernel = _mm_bias_kernel_inplace
        scratch_shapes = []
        scratch_bytes = 0
    else:
        kernel = _mm_bias_kernel_acc
        scratch_shapes = [pltpu.VMEM((tm, tn), jnp.float32)]
        scratch_bytes = tm * tn * 4

    # ---- Explicit VMEM budget (double-buffered A / X / C / O + scratch). ----
    itemsize = jnp.dtype(out_dtype).itemsize
    vmem_need = (
        2 * (tm * tk * a_p.dtype.itemsize)
        + 2 * (tk * tn * x_p.dtype.itemsize)
        + 2 * (tm * tn * c.dtype.itemsize)
        + 2 * (tm * tn * itemsize)
        + scratch_bytes
    )
    # 2x margin, floor 32 MiB, cap below v7x's 64 MiB physical VMEM.
    vmem_limit = max(32 << 20, min(2 * vmem_need + (2 << 20), 48 << 20))

    cost = pl.CostEstimate(
        flops=2 * M * N * K,
        transcendentals=0,
        bytes_accessed=(
            M * K * a.dtype.itemsize
            + K * N * x1.dtype.itemsize
            + M * N * c.dtype.itemsize
            + M * N * itemsize
        ),
    )

    return pl.pallas_call(
        kernel,
        out_shape=jax.ShapeDtypeStruct((M, N), out_dtype),
        grid_spec=pltpu.PrefetchScalarGridSpec(
            num_scalar_prefetch=0,
            grid=grid,
            in_specs=[
                pl.BlockSpec((tm, tk), lambda i, j, k: (i, k)),  # A tile
                pl.BlockSpec((tk, tn), lambda i, j, k: (k, j)),  # X1 tile
                pl.BlockSpec((tm, tn), lambda i, j, k: (i, j)),  # C tile (k-invariant)
            ],
            out_specs=pl.BlockSpec((tm, tn), lambda i, j, k: (i, j)),
            scratch_shapes=scratch_shapes,
        ),
        compiler_params=pltpu.CompilerParams(
            dimension_semantics=("parallel", "parallel", "arbitrary"),
            vmem_limit_bytes=int(vmem_limit),
        ),
        cost_estimate=cost,
    )(a_p, x_p, c)


def model_forward(x1, x2, a, b, c):
    # x2 and b are unused by the reference forward; kept for signature parity
    # and never passed into pallas_call (no wasted DMA).
    del x2, b
    return matmul_bias(a, x1, c)


if __name__ == "__main__":
    key = jax.random.PRNGKey(0)
    k1, k2, k3, k4, k5, k6, k7, k8 = jax.random.split(key, 8)

    # --- Spec-faithful shapes from the module: 3x3 matrices (torch.randn(3, 3)).
    #     Goes through the tiny-problem fast path (plain XLA), as recommended.
    x1 = jax.random.normal(k1, (3, 3), dtype=jnp.float32)
    x2 = jax.random.normal(k2, (3, 3), dtype=jnp.float32)  # unused by forward
    a = jax.random.normal(k3, (3, 3), dtype=jnp.float32)
    b = jax.random.normal(k4, (3, 3), dtype=jnp.float32)   # unused by forward
    c = jax.random.normal(k5, (3, 3), dtype=jnp.float32)

    out_small = model_forward(x1, x2, a, b, c)
    jax.block_until_ready(out_small)
    ref_small = a @ x1 + c
    assert jnp.allclose(out_small, ref_small, atol=1e-5, rtol=1e-5), \
        "3x3 mismatch vs reference"

    # --- Larger, non-tile-aligned shapes to exercise the Pallas path:
    #     partial N output tiles (masked writes), K-tail zero padding,
    #     multiple k accumulation steps, and the megacore tile split.
    M, K, N = 384, 1000, 384
    a_big = jax.random.normal(k6, (M, K), dtype=jnp.float32)
    x_big = jax.random.normal(k7, (K, N), dtype=jnp.float32)
    c_big = jax.random.normal(k8, (M, N), dtype=jnp.float32)

    out_big = matmul_bias(a_big, x_big, c_big)
    jax.block_until_ready(out_big)
    ref_big = a_big @ x_big + c_big
    assert out_big.shape == (M, N) and out_big.dtype == jnp.float32
    assert jnp.allclose(out_big, ref_big, atol=2e-3, rtol=2e-3), \
        "tiled-path mismatch vs reference"

    print("KERNEL_OK")
</pallas_src>

<mosaic_0001>
module attributes {stable_mosaic.version = 11 : i64} {
  func.func @_mm_bias_kernel_inplace(%arg0: i32, %arg1: i32, %arg2: i32, %arg3: memref<384x512xf32, #tpu.memory_space<vmem>>, %arg4: memref<512x256xf32, #tpu.memory_space<vmem>>, %arg5: memref<384x256xf32, #tpu.memory_space<vmem>>, %arg6: memref<384x256xf32, #tpu.memory_space<vmem>>) attributes {dimension_semantics = [#tpu.dimension_semantics<parallel>, #tpu.dimension_semantics<parallel>, #tpu.dimension_semantics<arbitrary>], iteration_bounds = array<i64: 1, 2, 2>, scalar_prefetch = 0 : i64, scratch_operands = 0 : i64, tpu.core_type = #tpu.core_type<tc>, window_params = [{transform_indices = @transform_0, window_bounds = array<i64: 384, 512>}, {transform_indices = @transform_1, window_bounds = array<i64: 512, 256>}, {transform_indices = @transform_2, window_bounds = array<i64: 384, 256>}, {transform_indices = @transform_3, window_bounds = array<i64: 384, 256>}]} {
    %c0_i32 = arith.constant 0 : i32
    %0 = arith.cmpi eq, %arg2, %c0_i32 : i32
    %1 = arith.extui %0 : i1 to i32
    %c0_i32_0 = arith.constant 0 : i32
    %2 = arith.cmpi ne, %1, %c0_i32_0 : i32
    scf.if %2 {
      %c0_8 = arith.constant 0 : index
      %c0_9 = arith.constant 0 : index
      %9 = vector.load %arg5[%c0_8, %c0_9] : memref<384x256xf32, #tpu.memory_space<vmem>>, vector<384x256xf32>
      %c0_10 = arith.constant 0 : index
      %c0_11 = arith.constant 0 : index
      %10 = vector.load %arg6[%c0_10, %c0_11] : memref<384x256xf32, #tpu.memory_space<vmem>>, vector<384x256xf32>
      tpu.vector_store %arg6[%c0_10, %c0_11], %9 {strides = array<i32>} : memref<384x256xf32, #tpu.memory_space<vmem>>, vector<384x256xf32>,
    } else {
    }
    %c0 = arith.constant 0 : index
    %c0_1 = arith.constant 0 : index
    %3 = vector.load %arg6[%c0, %c0_1] : memref<384x256xf32, #tpu.memory_space<vmem>>, vector<384x256xf32>
    %c0_2 = arith.constant 0 : index
    %c0_3 = arith.constant 0 : index
    %4 = vector.load %arg3[%c0_2, %c0_3] : memref<384x512xf32, #tpu.memory_space<vmem>>, vector<384x512xf32>
    %c0_4 = arith.constant 0 : index
    %c0_5 = arith.constant 0 : index
    %5 = vector.load %arg4[%c0_4, %c0_5] : memref<512x256xf32, #tpu.memory_space<vmem>>, vector<512x256xf32>
    %cst = arith.constant dense<0.000000e+00> : vector<384x256xf32>
    %6 = tpu.matmul %4, %5, %cst {dimension_numbers = #tpu.dot_dimension_numbers<[1], [0], [0], [1], [0, 0, 1, 1], [], []>} : vector<384x512xf32>, vector<512x256xf32>, vector<384x256xf32> -> vector<384x256xf32>
    %7 = arith.addf %3, %6 : vector<384x256xf32>
    %c0_6 = arith.constant 0 : index
    %c0_7 = arith.constant 0 : index
    %8 = vector.load %arg6[%c0_6, %c0_7] : memref<384x256xf32, #tpu.memory_space<vmem>>, vector<384x256xf32>
    tpu.vector_store %arg6[%c0_6, %c0_7], %7 {strides = array<i32>} : memref<384x256xf32, #tpu.memory_space<vmem>>, vector<384x256xf32>,
    return
  }
  func.func @transform_0(%arg0: i32, %arg1: i32, %arg2: i32) -> (i32, i32) {
    %c0_i32 = arith.constant 0 : i32
    return %arg0, %arg2 : i32, i32
  }
  func.func @transform_1(%arg0: i32, %arg1: i32, %arg2: i32) -> (i32, i32) {
    %c0_i32 = arith.constant 0 : i32
    return %arg2, %arg1 : i32, i32
  }
  func.func @transform_2(%arg0: i32, %arg1: i32, %arg2: i32) -> (i32, i32) {
    %c0_i32 = arith.constant 0 : i32
    return %arg0, %arg1 : i32, i32
  }
  func.func @transform_3(%arg0: i32, %arg1: i32, %arg2: i32) -> (i32, i32) {
    %c0_i32 = arith.constant 0 : i32
    return %arg0, %arg1 : i32, i32
  }
}

</mosaic_0001>

<llo_original>
// kernel: tpu_custom_call.1
$region0: #{tpu_custom_call.1}
  #allocation0 [shape = 'u32[]', space=smem, size = 0x4, offset = 0x4, fixed_abs, tag = 'smem constant byte address 0x4 - core index']
  #allocation1 [shape = 'u32[144,128]{1,0:T(1,128)}', space=vmem, size = 0x12000, scoped, tag = 'internal scratch']
  %s0 = inlined_call_operand.hbm [shape: f32[384,1024], index: 0, kind: input, shape index: {}]
  %s1 = inlined_call_operand.hbm [shape: f32[1024,384], index: 1, kind: input, shape index: {}]
  %s2 = inlined_call_operand.hbm [shape: f32[384,384], index: 2, kind: input, shape index: {}]
  %s3 = inlined_call_operand.hbm [shape: f32[384,384], index: 3, kind: output, shape index: {}]
  %s4 = sld [smem:[#allocation0]]
  $region61: #{tpu_custom_call.1} parent=0
    _
  %s6 = ssub.s32 1, %s4
  %s7 = scalar_select 0, %s6, %s4
  $region1: #{tpu_custom_call.1} parent=0
    #allocation2 [shape = 'u8[1572864]{0}', space=vmem, size = 0x180000, scoped, tag = 'input window, operand 0']
    #allocation3 [shape = 's32[2]{0}', space=sflag, size = 0x8, scoped, tag = 'scoped memory for tpu_custom_call.1']
    #allocation4 [shape = 's32[2]{0}', space=sflag, size = 0x8, scoped, tag = 'scoped memory for tpu_custom_call.1']
    #allocation5 [shape = 'u8[1048576]{0}', space=vmem, size = 0x100000, scoped, tag = 'input window, operand 1']
    #allocation6 [shape = 's32[2]{0}', space=sflag, size = 0x8, scoped, tag = 'scoped memory for tpu_custom_call.1']
    #allocation7 [shape = 'u8[786432]{0}', space=vmem, size = 0xc0000, scoped, tag = 'input window, operand 2']
    #allocation8 [shape = 'u8[786432]{0}', space=vmem, size = 0xc0000, scoped, tag = 'output window, operand 0']
    %8 = vsyncpa [#allocation3], 0
    %s9 = scalar_lea.sflag [#allocation3], 1
    %10 = vsyncpa %s9, 0
    %11 = vsyncpa [#allocation6], 0
    %s12 = scalar_lea.sflag [#allocation6], 1
    %13 = vsyncpa %s12, 0
    %14 = vsyncpa [#allocation4], 0
    %s15 = scalar_lea.sflag [#allocation4], 1
    %16 = vsyncpa %s15, 0
    loop: start=0, step=1, limit=6
    $region2: #{tpu_custom_call.1} parent=1 // loop_pre_header
      _
    $region3: #{tpu_custom_call.1} parent=1 // loop_header
      %s18 = sphi 0, %s22
      %p19 = scmp.ge.s32.totalorder %s18, 6
      %s25 = sphi 0, %s44
      %s26 = sphi 0, %s40
      %s27 = sphi 0, %s36
      %s28 = sphi 0, %s25
      %s29 = sphi 0, %s26
      %s30 = sphi 0, %s27
      %s31 = sphi 0, %s28
      %s32 = sphi 0, %s29
      %s33 = sphi 0, %s30
      %s49 = sphi 0, %s51
      %s52 = sphi 0, %s49
      %s53 = sphi 0, %s52
      %s69 = sphi 0, %s53
      %s77 = sphi 0, %s79
      %s80 = sphi 0, %s77
      %s81 = sphi 0, %s80
      %s97 = sphi 0, %s81
      %s105 = sphi 0, %s107
      %s108 = sphi 0, %s105
      %s109 = sphi 0, %s108
      %s125 = sphi 0, %s109
      %s133 = sphi 0, %s135
      %s136 = sphi 0, %s133
      %s137 = sphi 0, %s136
      %s153 = sphi 0, %s137
    $region4: #{tpu_custom_call.1} parent=1 // loop_header_branch
      %21 = sbr.rel (%p19) target = $region8
    $region5: #{tpu_custom_call.1} parent=1 // loop_body
      %s23 = ssub.s32 %s18, 1
      %s24 = ssub.s32 %s18, 2
      %s34 = sadd.s32 1, %s27
      %p35 = scmp.ge.s32.totalorder %s34, 2
      %s36 = scalar_select %p35, 0, %s34
      %s37 = sadd.s32 1, %s26
      %s38 = scalar_select %p35, %s37, %s26
      %p39 = scmp.ge.s32.totalorder %s38, 2
      %s40 = scalar_select %p39, 0, %s38
      %s41 = sadd.s32 1, %s25
      %s42 = scalar_select %p39, %s41, %s25
      %p43 = scmp.ge.s32.totalorder %s42, 1
      %s44 = scalar_select %p43, 0, %s42
      %s45 = ssub.s32 %s25, %s44
      %s46 = ssub.s32 %s27, %s36
      %s47 = sor.u32 %s45, %s46
      %p48 = scmp.eq.s32.totalorder %s47, 0
      %s50 = sadd.s32 %s49, 1
      %s51 = scalar_select %p48, %s49, %s50
      %p54 = pneg %p48
      %p55 = scmp.eq.s32.totalorder %s18, 3
      %p56 = por %p54, %p55
      %p57 = scmp.ne.s32.totalorder %s49, %s52
      %p58 = scmp.eq.s32.totalorder %s18, 0
      %p59 = por %p57, %p58
      %p60 = scmp.ne.s32.totalorder %s49, %s52
      %p61 = scmp.eq.s32.totalorder %s23, 3
      %p62 = por %p60, %p61
      %p63 = scmp.ne.s32.totalorder %s52, %s53
      %p64 = scmp.eq.s32.totalorder %s23, 0
      %p65 = por %p63, %p64
      %p66 = scmp.ne.s32.totalorder %s52, %s53
      %p67 = scmp.eq.s32.totalorder %s24, 3
      %p68 = por %p66, %p67
      %p70 = scmp.ne.s32.totalorder %s53, %s69
      %p71 = scmp.eq.s32.totalorder %s24, 0
      %p72 = por %p70, %p71
      %s73 = ssub.s32 %s27, %s36
      %s74 = ssub.s32 %s26, %s40
      %s75 = sor.u32 %s73, %s74
      %p76 = scmp.eq.s32.totalorder %s75, 0
      %s78 = sadd.s32 %s77, 1
      %s79 = scalar_select %p76, %s77, %s78
      %p82 = pneg %p76
      %p83 = scmp.eq.s32.totalorder %s18, 3
      %p84 = por %p82, %p83
      %p85 = scmp.ne.s32.totalorder %s77, %s80
      %p86 = scmp.eq.s32.totalorder %s18, 0
      %p87 = por %p85, %p86
      %p88 = scmp.ne.s32.totalorder %s77, %s80
      %p89 = scmp.eq.s32.totalorder %s23, 3
      %p90 = por %p88, %p89
      %p91 = scmp.ne.s32.totalorder %s80, %s81
      %p92 = scmp.eq.s32.totalorder %s23, 0
      %p93 = por %p91, %p92
      %p94 = scmp.ne.s32.totalorder %s80, %s81
      %p95 = scmp.eq.s32.totalorder %s24, 3
      %p96 = por %p94, %p95
      %p98 = scmp.ne.s32.totalorder %s81, %s97
      %p99 = scmp.eq.s32.totalorder %s24, 0
      %p100 = por %p98, %p99
      %s101 = ssub.s32 %s25, %s44
      %s102 = ssub.s32 %s26, %s40
      %s103 = sor.u32 %s101, %s102
      %p104 = scmp.eq.s32.totalorder %s103, 0
      %s106 = sadd.s32 %s105, 1
      %s107 = scalar_select %p104, %s105, %s106
      %p110 = pneg %p104
      %p111 = scmp.eq.s32.totalorder %s18, 3
      %p112 = por %p110, %p111
      %p113 = scmp.ne.s32.totalorder %s105, %s108
      %p114 = scmp.eq.s32.totalorder %s18, 0
      %p115 = por %p113, %p114
      %p116 = scmp.ne.s32.totalorder %s105, %s108
      %p117 = scmp.eq.s32.totalorder %s23, 3
      %p118 = por %p116, %p117
      %p119 = scmp.ne.s32.totalorder %s108, %s109
      %p120 = scmp.eq.s32.totalorder %s23, 0
      %p121 = por %p119, %p120
      %p122 = scmp.ne.s32.totalorder %s108, %s109
      %p123 = scmp.eq.s32.totalorder %s24, 3
      %p124 = por %p122, %p123
      %p126 = scmp.ne.s32.totalorder %s109, %s125
      %p127 = scmp.eq.s32.totalorder %s24, 0
      %p128 = por %p126, %p127
      %s129 = ssub.s32 %s25, %s44
      %s130 = ssub.s32 %s26, %s40
      %s131 = sor.u32 %s129, %s130
      %p132 = scmp.eq.s32.totalorder %s131, 0
      %s134 = sadd.s32 %s133, 1
      %s135 = scalar_select %p132, %s133, %s134
      %p138 = pneg %p132
      %p139 = scmp.eq.s32.totalorder %s18, 3
      %p140 = por %p138, %p139
      %p141 = scmp.ne.s32.totalorder %s133, %s136
      %p142 = scmp.eq.s32.totalorder %s18, 0
      %p143 = por %p141, %p142
      %p144 = scmp.ne.s32.totalorder %s133, %s136
      %p145 = scmp.eq.s32.totalorder %s23, 3
      %p146 = por %p144, %p145
      %p147 = scmp.ne.s32.totalorder %s136, %s137
      %p148 = scmp.eq.s32.totalorder %s23, 0
      %p149 = por %p147, %p148
      %p150 = scmp.ne.s32.totalorder %s136, %s137
      %p151 = scmp.eq.s32.totalorder %s24, 3
      %p152 = por %p150, %p151
      %p154 = scmp.ne.s32.totalorder %s137, %s153
      %p155 = scmp.eq.s32.totalorder %s24, 0
      %p156 = por %p154, %p155
      %p157 = scmp.le.s32.totalorder 1, %s18
      %p158 = scmp.lt.s32.totalorder %s18, 5
      %p159 = pnand %p157, %p158
      %p160 = pneg %p159
      // Predicated region
      $region9: #{tpu_custom_call.1} parent=5 // pred_check
        _
      $region10: #{tpu_custom_call.1} parent=5 // pred_check_branch
        %162 = sbr.rel (%p159) target = $region12
      $region11: #{tpu_custom_call.1} parent=5 // pred_region
        %s163 = ssub.s32 %s18, 1
      $region12: #{tpu_custom_call.1} parent=5 // pred_fallthru
        _
      %p164 = scmp.lt.s32.totalorder %s18, 4
      // Predicated region
      $region13: #{tpu_custom_call.1} parent=5 // pred_check
        %p165 = pneg %p164
      $region14: #{tpu_custom_call.1} parent=5 // pred_check_branch
        %167 = sbr.rel (%p165) target = $region16
      $region15: #{tpu_custom_call.1} parent=5 // pred_region
        // Predicated region
        $region17: #{tpu_custom_call.1} parent=15 // pred_check
          %p168 = pneg %p59
        $region18: #{tpu_custom_call.1} parent=15 // pred_check_branch
          %170 = sbr.rel (%p168) target = $region20
        $region19: #{tpu_custom_call.1} parent=15 // pred_region
          %s171 = sand.u32 %s49, 1
          %s172 = scalar_lea.sflag [#allocation3], %s171
          %s173 = sand.u32 %s49, 1
          %s174 = smul.addr %s173, 1536
          %s175 = scalar_lea.vmem [#allocation2], %s174
          %s176 = smul.u32 48, %s25
          %s177 = smul.u32 4, %s27
          %s179 = ssub.s32 24576, 24576
          %180 = vsyncadd %s172, %s179
          %s181 = smul.addr %s176, 8
          %s182 = sadd.s32 %s177, %s181
          %s183 = smul.addr %s182, 128
          %s184 = scalar_lea.hbm %s0, %s183
          %s185 = sshll.u32 %s175, 4
          %s186 = int_to_ptr.vmem [resolvable:$true] %s185
          %191 = dma.hbm_to_vmem [thread:$0]  %s184, 24576, %s186, %s172, 1024, 512, 32
        $region20: #{tpu_custom_call.1} parent=15 // pred_fallthru
          _
        // Predicated region
        $region21: #{tpu_custom_call.1} parent=15 // pred_check
          %p192 = pneg %p87
        $region22: #{tpu_custom_call.1} parent=15 // pred_check_branch
          %194 = sbr.rel (%p192) target = $region24
        $region23: #{tpu_custom_call.1} parent=15 // pred_region
          %s195 = sand.u32 %s18, 1
          %s196 = scalar_lea.sflag [#allocation6], %s195
          %s197 = sand.u32 %s77, 1
          %s198 = smul.addr %s197, 1024
          %s199 = scalar_lea.vmem [#allocation5], %s198
          %s200 = smul.u32 64, %s27
          %s201 = smul.u32 2, %s26
          %s202 = ssub.s32 3, %s201
          %p203 = scmp.lt.s32.totalorder %s202, 2
          %s204 = scalar_select %p203, %s202, 2
          %s205 = smul.u32 8192, %s204
          %s207 = ssub.s32 16384, %s205
          %208 = vsyncadd %s196, %s207
          %p209 = scmp.ne.s32.totalorder 0, %s205
          %s210 = smul.addr %s200, 3
          %s211 = sadd.s32 %s201, %s210
          %s212 = smul.addr %s211, 128
          %s213 = scalar_lea.hbm %s1, %s212
          %s214 = smul.u32 %s204, 8
          %s215 = smul.u32 %s214, 64
          %s216 = sshll.u32 %s199, 4
          %s217 = int_to_ptr.vmem [resolvable:$true] %s216
          %s218 = sshll.u32 %s215, 4
          %222 = dma.hbm_to_vmem [thread:$0]  (%p209), %s213, %s218, %s217, %s196, 384, 256, %s214
        $region24: #{tpu_custom_call.1} parent=15 // pred_fallthru
          _
        // Predicated region
        $region25: #{tpu_custom_call.1} parent=15 // pred_check
          %p223 = pneg %p115
        $region26: #{tpu_custom_call.1} parent=15 // pred_check_branch
          %225 = sbr.rel (%p223) target = $region28
        $region27: #{tpu_custom_call.1} parent=15 // pred_region
          %s226 = sand.u32 %s18, 1
          %s227 = scalar_lea.sflag [#allocation6], %s226
          %s228 = sand.u32 %s105, 1
          %s229 = smul.addr %s228, 768
          %s230 = scalar_lea.vmem [#allocation7], %s229
          %s231 = smul.u32 48, %s25
          %s232 = smul.u32 2, %s26
          %s233 = ssub.s32 3, %s232
          %p234 = scmp.lt.s32.totalorder %s233, 2
          %s235 = scalar_select %p234, %s233, 2
          %s236 = smul.u32 6144, %s235
          %s238 = ssub.s32 12288, %s236
          %239 = vsyncadd %s227, %s238
          %p240 = scmp.ne.s32.totalorder 0, %s236
          %s241 = smul.addr %s231, 3
          %s242 = sadd.s32 %s232, %s241
          %s243 = smul.addr %s242, 128
          %s244 = scalar_lea.hbm %s2, %s243
          %s245 = smul.u32 %s235, 8
          %s246 = smul.u32 %s245, 48
          %s247 = sshll.u32 %s230, 4
          %s248 = int_to_ptr.vmem [resolvable:$true] %s247
          %s249 = sshll.u32 %s246, 4
          %253 = dma.hbm_to_vmem [thread:$0]  (%p240), %s244, %s249, %s248, %s227, 384, 256, %s245
        $region28: #{tpu_custom_call.1} parent=15 // pred_fallthru
          _
      $region16: #{tpu_custom_call.1} parent=5 // pred_fallthru
        _
      %p254 = scmp.le.s32.totalorder 1, %s18
      %p255 = scmp.lt.s32.totalorder %s18, 5
      %p256 = pnand %p254, %p255
      %p257 = pneg %p256
      // Predicated region
      $region29: #{tpu_custom_call.1} parent=5 // pred_check
        _
      $region30: #{tpu_custom_call.1} parent=5 // pred_check_branch
        %259 = sbr.rel (%p256) target = $region32
      $region31: #{tpu_custom_call.1} parent=5 // pred_region
        %s260 = ssub.s32 %s18, 1
        %s261 = sand.u32 %s52, 1
        %s262 = scalar_lea.sflag [#allocation3], %s261
        %s263 = sand.u32 %s52, 1
        %s264 = smul.addr %s263, 1536
        %s265 = scalar_lea.vmem [#allocation2], %s264
        // Predicated region
        $region33: #{tpu_custom_call.1} parent=31 // pred_check
          %p266 = pneg %p65
        $region34: #{tpu_custom_call.1} parent=31 // pred_check_branch
          %268 = sbr.rel (%p266) target = $region36
        $region35: #{tpu_custom_call.1} parent=31 // pred_region
          %269 = dma.done %s262, 24576
        $region36: #{tpu_custom_call.1} parent=31 // pred_fallthru
          _
        %s270 = sand.u32 %s23, 1
        %s271 = scalar_lea.sflag [#allocation6], %s270
        %s272 = sand.u32 %s80, 1
        %s273 = smul.addr %s272, 1024
        %s274 = scalar_lea.vmem [#allocation5], %s273
        // Predicated region
        $region37: #{tpu_custom_call.1} parent=31 // pred_check
          %p275 = pneg %p93
        $region38: #{tpu_custom_call.1} parent=31 // pred_check_branch
          %277 = sbr.rel (%p275) target = $region40
        $region39: #{tpu_custom_call.1} parent=31 // pred_region
          %278 = dma.done %s271, 16384
        $region40: #{tpu_custom_call.1} parent=31 // pred_fallthru
          _
        %s279 = sand.u32 %s23, 1
        %s280 = scalar_lea.sflag [#allocation6], %s279
        %s281 = sand.u32 %s108, 1
        %s282 = smul.addr %s281, 768
        %s283 = scalar_lea.vmem [#allocation7], %s282
        // Predicated region
        $region41: #{tpu_custom_call.1} parent=31 // pred_check
          %p284 = pneg %p121
        $region42: #{tpu_custom_call.1} parent=31 // pred_check_branch
          %286 = sbr.rel (%p284) target = $region44
        $region43: #{tpu_custom_call.1} parent=31 // pred_region
          %287 = dma.done %s280, 12288
        $region44: #{tpu_custom_call.1} parent=31 // pred_fallthru
          _
        %s288 = sand.u32 %s52, 1
        %s289 = scalar_lea.sflag [#allocation3], %s288
        %s290 = sand.u32 %s52, 1
        %s291 = smul.addr %s290, 1536
        %s292 = scalar_lea.vmem [#allocation2], %s291
        %p293 = pneg %p65
        %p294 = pneg %p62
        %s295 = sand.u32 %s23, 1
        %s296 = scalar_lea.sflag [#allocation6], %s295
        %s297 = sand.u32 %s80, 1
        %s298 = smul.addr %s297, 1024
        %s299 = scalar_lea.vmem [#allocation5], %s298
        %p300 = pneg %p93
        %p301 = pneg %p90
        %s302 = sand.u32 %s23, 1
        %s303 = scalar_lea.sflag [#allocation6], %s302
        %s304 = sand.u32 %s108, 1
        %s305 = smul.addr %s304, 768
        %s306 = scalar_lea.vmem [#allocation7], %s305
        %p307 = pneg %p121
        %p308 = pneg %p118
        %p309 = pneg %p149
        %p310 = pneg %p146
        %s311 = sand.u32 %s136, 1
        %s312 = scalar_lea.sflag [#allocation4], %s311
        %s313 = sand.u32 %s136, 1
        %s314 = smul.addr %s313, 768
        %s315 = scalar_lea.vmem [#allocation8], %s314
        %s316 = smul.u32 48, %s28
        %s317 = smul.u32 4, %s30
        %s318 = smul.u32 64, %s30
        %s319 = smul.u32 2, %s29
        %s320 = ssub.s32 3, %s319
        %p321 = scmp.lt.s32.totalorder %s320, 2
        %s322 = scalar_select %p321, %s320, 2
        %s323 = smul.u32 8192, %s322
        %s324 = smul.u32 48, %s28
        %s325 = smul.u32 2, %s29
        %s326 = ssub.s32 3, %s325
        %p327 = scmp.lt.s32.totalorder %s326, 2
        %s328 = scalar_select %p327, %s326, 2
        %s329 = smul.u32 6144, %s328
        %s330 = smul.u32 48, %s28
        %s331 = smul.u32 2, %s29
        %s332 = ssub.s32 3, %s331
        %p333 = scmp.lt.s32.totalorder %s332, 2
        %s334 = scalar_select %p333, %s332, 2
        %s335 = smul.u32 6144, %s334
        %p336 = scmp.eq.s32.totalorder %s30, 0
        // Predicated region
        $region45: #{tpu_custom_call.1} parent=31 // pred_check
          %p337 = pneg %p336
        $region46: #{tpu_custom_call.1} parent=31 // pred_check_branch
          %339 = sbr.rel (%p337) target = $region48
        $region47: #{tpu_custom_call.1} parent=31 // pred_region
          %v340 = vld [vmem:[%s283] sm:$0xff]
          %v341 = vld [vmem:[%s283 + $0x8] sm:$0xff]
          %v342 = vld [vmem:[%s283 + $0x10] sm:$0xff]
          %v343 = vld [vmem:[%s283 + $0x18] sm:$0xff]
          %v344 = vld [vmem:[%s283 + $0x20] sm:$0xff]
          %v345 = vld [vmem:[%s283 + $0x28] sm:$0xff]
          %v346 = vld [vmem:[%s283 + $0x30] sm:$0xff]
          %v347 = vld [vmem:[%s283 + $0x38] sm:$0xff]
          %v348 = vld [vmem:[%s283 + $0x40] sm:$0xff]
          %v349 = vld [vmem:[%s283 + $0x48] sm:$0xff]
          %v350 = vld [vmem:[%s283 + $0x50] sm:$0xff]
          %v351 = vld [vmem:[%s283 + $0x58] sm:$0xff]
          %v352 = vld [vmem:[%s283 + $0x60] sm:$0xff]
          %v353 = vld [vmem:[%s283 + $0x68] sm:$0xff]
          %v354 = vld [vmem:[%s283 + $0x70] sm:$0xff]
          %v355 = vld [vmem:[%s283 + $0x78] sm:$0xff]
          %v356 = vld [vmem:[%s283 + $0x80] sm:$0xff]
          %v357 = vld [vmem:[%s283 + $0x88] sm:$0xff]
          %v358 = vld [vmem:[%s283 + $0x90] sm:$0xff]
          %v359 = vld [vmem:[%s283 + $0x98] sm:$0xff]
          %v360 = vld [vmem:[%s283 + $0xa0] sm:$0xff]
          %v361 = vld [vmem:[%s283 + $0xa8] sm:$0xff]
          %v362 = vld [vmem:[%s283 + $0xb0] sm:$0xff]
          %v363 = vld [vmem:[%s283 + $0xb8] sm:$0xff]
          %v364 = vld [vmem:[%s283 + $0xc0] sm:$0xff]
          %v365 = vld [vmem:[%s283 + $0xc8] sm:$0xff]
          %v366 = vld [vmem:[%s283 + $0xd0] sm:$0xff]
          %v367 = vld [vmem:[%s283 + $0xd8] sm:$0xff]
          %v368 = vld [vmem:[%s283 + $0xe0] sm:$0xff]
          %v369 = vld [vmem:[%s283 + $0xe8] sm:$0xff]
          %v370 = vld [vmem:[%s283 + $0xf0] sm:$0xff]
          %v371 = vld [vmem:[%s283 + $0xf8] sm:$0xff]
          %v372 = vld [vmem:[%s283 + $0x100] sm:$0xff]
          %v373 = vld [vmem:[%s283 + $0x108] sm:$0xff]
          %v374 = vld [vmem:[%s283 + $0x110] sm:$0xff]
          %v375 = vld [vmem:[%s283 + $0x118] sm:$0xff]
          %v376 = vld [vmem:[%s283 + $0x120] sm:$0xff]
          %v377 = vld [vmem:[%s283 + $0x128] sm:$0xff]
          %v378 = vld [vmem:[%s283 + $0x130] sm:$0xff]
          %v379 = vld [vmem:[%s283 + $0x138] sm:$0xff]
          %v380 = vld [vmem:[%s283 + $0x140] sm:$0xff]
          %v381 = vld [vmem:[%s283 + $0x148] sm:$0xff]
          %v382 = vld [vmem:[%s283 + $0x150] sm:$0xff]
          %v383 = vld [vmem:[%s283 + $0x158] sm:$0xff]
          %v384 = vld [vmem:[%s283 + $0x160] sm:$0xff]
          %v385 = vld [vmem:[%s283 + $0x168] sm:$0xff]
          %v386 = vld [vmem:[%s283 + $0x170] sm:$0xff]
          %v387 = vld [vmem:[%s283 + $0x178] sm:$0xff]
          %v388 = vld [vmem:[%s283 + $0x180] sm:$0xff]
          %v389 = vld [vmem:[%s283 + $0x188] sm:$0xff]
          %v390 = vld [vmem:[%s283 + $0x190] sm:$0xff]
          %v391 = vld [vmem:[%s283 + $0x198] sm:$0xff]
          %v392 = vld [vmem:[%s283 + $0x1a0] sm:$0xff]
          %v393 = vld [vmem:[%s283 + $0x1a8] sm:$0xff]
          %v394 = vld [vmem:[%s283 + $0x1b0] sm:$0xff]
          %v395 = vld [vmem:[%s283 + $0x1b8] sm:$0xff]
          %v396 = vld [vmem:[%s283 + $0x1c0] sm:$0xff]
          %v397 = vld [vmem:[%s283 + $0x1c8] sm:$0xff]
          %v398 = vld [vmem:[%s283 + $0x1d0] sm:$0xff]
          %v399 = vld [vmem:[%s283 + $0x1d8] sm:$0xff]
          %v400 = vld [vmem:[%s283 + $0x1e0] sm:$0xff]
          %v401 = vld [vmem:[%s283 + $0x1e8] sm:$0xff]
          %v402 = vld [vmem:[%s283 + $0x1f0] sm:$0xff]
          %v403 = vld [vmem:[%s283 + $0x1f8] sm:$0xff]
          %v404 = vld [vmem:[%s283 + $0x200] sm:$0xff]
          %v405 = vld [vmem:[%s283 + $0x208] sm:$0xff]
          %v406 = vld [vmem:[%s283 + $0x210] sm:$0xff]
          %v407 = vld [vmem:[%s283 + $0x218] sm:$0xff]
          %v408 = vld [vmem:[%s283 + $0x220] sm:$0xff]
          %v409 = vld [vmem:[%s283 + $0x228] sm:$0xff]
          %v410 = vld [vmem:[%s283 + $0x230] sm:$0xff]
          %v411 = vld [vmem:[%s283 + $0x238] sm:$0xff]
          %v412 = vld [vmem:[%s283 + $0x240] sm:$0xff]
          %v413 = vld [vmem:[%s283 + $0x248] sm:$0xff]
          %v414 = vld [vmem:[%s283 + $0x250] sm:$0xff]
          %v415 = vld [vmem:[%s283 + $0x258] sm:$0xff]
          %v416 = vld [vmem:[%s283 + $0x260] sm:$0xff]
          %v417 = vld [vmem:[%s283 + $0x268] sm:$0xff]
          %v418 = vld [vmem:[%s283 + $0x270] sm:$0xff]
          %v419 = vld [vmem:[%s283 + $0x278] sm:$0xff]
          %v420 = vld [vmem:[%s283 + $0x280] sm:$0xff]
          %v421 = vld [vmem:[%s283 + $0x288] sm:$0xff]
          %v422 = vld [vmem:[%s283 + $0x290] sm:$0xff]
          %v423 = vld [vmem:[%s283 + $0x298] sm:$0xff]
          %v424 = vld [vmem:[%s283 + $0x2a0] sm:$0xff]
          %v425 = vld [vmem:[%s283 + $0x2a8] sm:$0xff]
          %v426 = vld [vmem:[%s283 + $0x2b0] sm:$0xff]
          %v427 = vld [vmem:[%s283 + $0x2b8] sm:$0xff]
          %v428 = vld [vmem:[%s283 + $0x2c0] sm:$0xff]
          %v429 = vld [vmem:[%s283 + $0x2c8] sm:$0xff]
          %v430 = vld [vmem:[%s283 + $0x2d0] sm:$0xff]
          %v431 = vld [vmem:[%s283 + $0x2d8] sm:$0xff]
          %v432 = vld [vmem:[%s283 + $0x2e0] sm:$0xff]
          %v433 = vld [vmem:[%s283 + $0x2e8] sm:$0xff]
          %v434 = vld [vmem:[%s283 + $0x2f0] sm:$0xff]
          %v435 = vld [vmem:[%s283 + $0x2f8] sm:$0xff]
          %436 = vst [vmem:[%s315] sm:$0xff] %v340
          %437 = vst [vmem:[%s315 + $0x8] sm:$0xff] %v341
          %438 = vst [vmem:[%s315 + $0x10] sm:$0xff] %v342
          %439 = vst [vmem:[%s315 + $0x18] sm:$0xff] %v343
          %440 = vst [vmem:[%s315 + $0x20] sm:$0xff] %v344
          %441 = vst [vmem:[%s315 + $0x28] sm:$0xff] %v345
          %442 = vst [vmem:[%s315 + $0x30] sm:$0xff] %v346
          %443 = vst [vmem:[%s315 + $0x38] sm:$0xff] %v347
          %444 = vst [vmem:[%s315 + $0x40] sm:$0xff] %v348
          %445 = vst [vmem:[%s315 + $0x48] sm:$0xff] %v349
          %446 = vst [vmem:[%s315 + $0x50] sm:$0xff] %v350
          %447 = vst [vmem:[%s315 + $0x58] sm:$0xff] %v351
          %448 = vst [vmem:[%s315 + $0x60] sm:$0xff] %v352
          %449 = vst [vmem:[%s315 + $0x68] sm:$0xff] %v353
          %450 = vst [vmem:[%s315 + $0x70] sm:$0xff] %v354
          %451 = vst [vmem:[%s315 + $0x78] sm:$0xff] %v355
          %452 = vst [vmem:[%s315 + $0x80] sm:$0xff] %v356
          %453 = vst [vmem:[%s315 + $0x88] sm:$0xff] %v357
          %454 = vst [vmem:[%s315 + $0x90] sm:$0xff] %v358
          %455 = vst [vmem:[%s315 + $0x98] sm:$0xff] %v359
          %456 = vst [vmem:[%s315 + $0xa0] sm:$0xff] %v360
          %457 = vst [vmem:[%s315 + $0xa8] sm:$0xff] %v361
          %458 = vst [vmem:[%s315 + $0xb0] sm:$0xff] %v362
          %459 = vst [vmem:[%s315 + $0xb8] sm:$0xff] %v363
          %460 = vst [vmem:[%s315 + $0xc0] sm:$0xff] %v364
          %461 = vst [vmem:[%s315 + $0xc8] sm:$0xff] %v365
          %462 = vst [vmem:[%s315 + $0xd0] sm:$0xff] %v366
          %463 = vst [vmem:[%s315 + $0xd8] sm:$0xff] %v367
          %464 = vst [vmem:[%s315 + $0xe0] sm:$0xff] %v368
          %465 = vst [vmem:[%s315 + $0xe8] sm:$0xff] %v369
          %466 = vst [vmem:[%s315 + $0xf0] sm:$0xff] %v370
          %467 = vst [vmem:[%s315 + $0xf8] sm:$0xff] %v371
          %468 = vst [vmem:[%s315 + $0x100] sm:$0xff] %v372
          %469 = vst [vmem:[%s315 + $0x108] sm:$0xff] %v373
          %470 = vst [vmem:[%s315 + $0x110] sm:$0xff] %v374
          %471 = vst [vmem:[%s315 + $0x118] sm:$0xff] %v375
          %472 = vst [vmem:[%s315 + $0x120] sm:$0xff] %v376
          %473 = vst [vmem:[%s315 + $0x128] sm:$0xff] %v377
          %474 = vst [vmem:[%s315 + $0x130] sm:$0xff] %v378
          %475 = vst [vmem:[%s315 + $0x138] sm:$0xff] %v379
          %476 = vst [vmem:[%s315 + $0x140] sm:$0xff] %v380
          %477 = vst [vmem:[%s315 + $0x148] sm:$0xff] %v381
          %478 = vst [vmem:[%s315 + $0x150] sm:$0xff] %v382
          %479 = vst [vmem:[%s315 + $0x158] sm:$0xff] %v383
          %480 = vst [vmem:[%s315 + $0x160] sm:$0xff] %v384
          %481 = vst [vmem:[%s315 + $0x168] sm:$0xff] %v385
          %482 = vst [vmem:[%s315 + $0x170] sm:$0xff] %v386
          %483 = vst [vmem:[%s315 + $0x178] sm:$0xff] %v387
          %484 = vst [vmem:[%s315 + $0x180] sm:$0xff] %v388
          %485 = vst [vmem:[%s315 + $0x188] sm:$0xff] %v389
          %486 = vst [vmem:[%s315 + $0x190] sm:$0xff] %v390
          %487 = vst [vmem:[%s315 + $0x198] sm:$0xff] %v391
          %488 = vst [vmem:[%s315 + $0x1a0] sm:$0xff] %v392
          %489 = vst [vmem:[%s315 + $0x1a8] sm:$0xff] %v393
          %490 = vst [vmem:[%s315 + $0x1b0] sm:$0xff] %v394
          %491 = vst [vmem:[%s315 + $0x1b8] sm:$0xff] %v395
          %492 = vst [vmem:[%s315 + $0x1c0] sm:$0xff] %v396
          %493 = vst [vmem:[%s315 + $0x1c8] sm:$0xff] %v397
          %494 = vst [vmem:[%s315 + $0x1d0] sm:$0xff] %v398
          %495 = vst [vmem:[%s315 + $0x1d8] sm:$0xff] %v399
          %496 = vst [vmem:[%s315 + $0x1e0] sm:$0xff] %v400
          %497 = vst [vmem:[%s315 + $0x1e8] sm:$0xff] %v401
          %498 = vst [vmem:[%s315 + $0x1f0] sm:$0xff] %v402
          %499 = vst [vmem:[%s315 + $0x1f8] sm:$0xff] %v403
          %500 = vst [vmem:[%s315 + $0x200] sm:$0xff] %v404
          %501 = vst [vmem:[%s315 + $0x208] sm:$0xff] %v405
          %502 = vst [vmem:[%s315 + $0x210] sm:$0xff] %v406
          %503 = vst [vmem:[%s315 + $0x218] sm:$0xff] %v407
          %504 = vst [vmem:[%s315 + $0x220] sm:$0xff] %v408
          %505 = vst [vmem:[%s315 + $0x228] sm:$0xff] %v409
          %506 = vst [vmem:[%s315 + $0x230] sm:$0xff] %v410
          %507 = vst [vmem:[%s315 + $0x238] sm:$0xff] %v411
          %508 = vst [vmem:[%s315 + $0x240] sm:$0xff] %v412
          %509 = vst [vmem:[%s315 + $0x248] sm:$0xff] %v413
          %510 = vst [vmem:[%s315 + $0x250] sm:$0xff] %v414
          %511 = vst [vmem:[%s315 + $0x258] sm:$0xff] %v415
          %512 = vst [vmem:[%s315 + $0x260] sm:$0xff] %v416
          %513 = vst [vmem:[%s315 + $0x268] sm:$0xff] %v417
          %514 = vst [vmem:[%s315 + $0x270] sm:$0xff] %v418
          %515 = vst [vmem:[%s315 + $0x278] sm:$0xff] %v419
          %516 = vst [vmem:[%s315 + $0x280] sm:$0xff] %v420
          %517 = vst [vmem:[%s315 + $0x288] sm:$0xff] %v421
          %518 = vst [vmem:[%s315 + $0x290] sm:$0xff] %v422
          %519 = vst [vmem:[%s315 + $0x298] sm:$0xff] %v423
          %520 = vst [vmem:[%s315 + $0x2a0] sm:$0xff] %v424
          %521 = vst [vmem:[%s315 + $0x2a8] sm:$0xff] %v425
          %522 = vst [vmem:[%s315 + $0x2b0] sm:$0xff] %v426
          %523 = vst [vmem:[%s315 + $0x2b8] sm:$0xff] %v427
          %524 = vst [vmem:[%s315 + $0x2c0] sm:$0xff] %v428
          %525 = vst [vmem:[%s315 + $0x2c8] sm:$0xff] %v429
          %526 = vst [vmem:[%s315 + $0x2d0] sm:$0xff] %v430
          %527 = vst [vmem:[%s315 + $0x2d8] sm:$0xff] %v431
          %528 = vst [vmem:[%s315 + $0x2e0] sm:$0xff] %v432
          %529 = vst [vmem:[%s315 + $0x2e8] sm:$0xff] %v433
          %530 = vst [vmem:[%s315 + $0x2f0] sm:$0xff] %v434
          %531 = vst [vmem:[%s315 + $0x2f8] sm:$0xff] %v435
        $region48: #{tpu_custom_call.1} parent=31 // pred_fallthru
          _
        %v532 = vld [vmem:[%s315] sm:$0xff]
        %v533 = vld [vmem:[%s315 + $0x8] sm:$0xff]
        %v534 = vld [vmem:[%s315 + $0x10] sm:$0xff]
        %v535 = vld [vmem:[%s315 + $0x18] sm:$0xff]
        %v536 = vld [vmem:[%s315 + $0x20] sm:$0xff]
        %v537 = vld [vmem:[%s315 + $0x28] sm:$0xff]
        %v538 = vld [vmem:[%s315 + $0x30] sm:$0xff]
        %v539 = vld [vmem:[%s315 + $0x38] sm:$0xff]
        %v540 = vld [vmem:[%s315 + $0x40] sm:$0xff]
        %v541 = vld [vmem:[%s315 + $0x48] sm:$0xff]
        %v542 = vld [vmem:[%s315 + $0x50] sm:$0xff]
        %v543 = vld [vmem:[%s315 + $0x58] sm:$0xff]
        %v544 = vld [vmem:[%s315 + $0x60] sm:$0xff]
        %v545 = vld [vmem:[%s315 + $0x68] sm:$0xff]
        %v546 = vld [vmem:[%s315 + $0x70] sm:$0xff]
        %v547 = vld [vmem:[%s315 + $0x78] sm:$0xff]
        %v548 = vld [vmem:[%s315 + $0x80] sm:$0xff]
        %v549 = vld [vmem:[%s315 + $0x88] sm:$0xff]
        %v550 = vld [vmem:[%s315 + $0x90] sm:$0xff]
        %v551 = vld [vmem:[%s315 + $0x98] sm:$0xff]
        %v552 = vld [vmem:[%s315 + $0xa0] sm:$0xff]
        %v553 = vld [vmem:[%s315 + $0xa8] sm:$0xff]
        %v554 = vld [vmem:[%s315 + $0xb0] sm:$0xff]
        %v555 = vld [vmem:[%s315 + $0xb8] sm:$0xff]
        %v556 = vld [vmem:[%s315 + $0xc0] sm:$0xff]
        %v557 = vld [vmem:[%s315 + $0xc8] sm:$0xff]
        %v558 = vld [vmem:[%s315 + $0xd0] sm:$0xff]
        %v559 = vld [vmem:[%s315 + $0xd8] sm:$0xff]
        %v560 = vld [vmem:[%s315 + $0xe0] sm:$0xff]
        %v561 = vld [vmem:[%s315 + $0xe8] sm:$0xff]
        %v562 = vld [vmem:[%s315 + $0xf0] sm:$0xff]
        %v563 = vld [vmem:[%s315 + $0xf8] sm:$0xff]
        %v564 = vld [vmem:[%s315 + $0x100] sm:$0xff]
        %v565 = vld [vmem:[%s315 + $0x108] sm:$0xff]
        %v566 = vld [vmem:[%s315 + $0x110] sm:$0xff]
        %v567 = vld [vmem:[%s315 + $0x118] sm:$0xff]
        %v568 = vld [vmem:[%s315 + $0x120] sm:$0xff]
        %v569 = vld [vmem:[%s315 + $0x128] sm:$0xff]
        %v570 = vld [vmem:[%s315 + $0x130] sm:$0xff]
        %v571 = vld [vmem:[%s315 + $0x138] sm:$0xff]
        %v572 = vld [vmem:[%s315 + $0x140] sm:$0xff]
        %v573 = vld [vmem:[%s315 + $0x148] sm:$0xff]
        %v574 = vld [vmem:[%s315 + $0x150] sm:$0xff]
        %v575 = vld [vmem:[%s315 + $0x158] sm:$0xff]
        %v576 = vld [vmem:[%s315 + $0x160] sm:$0xff]
        %v577 = vld [vmem:[%s315 + $0x168] sm:$0xff]
        %v578 = vld [vmem:[%s315 + $0x170] sm:$0xff]
        %v579 = vld [vmem:[%s315 + $0x178] sm:$0xff]
        %v580 = vld [vmem:[%s315 + $0x180] sm:$0xff]
        %v581 = vld [vmem:[%s315 + $0x188] sm:$0xff]
        %v582 = vld [vmem:[%s315 + $0x190] sm:$0xff]
        %v583 = vld [vmem:[%s315 + $0x198] sm:$0xff]
        %v584 = vld [vmem:[%s315 + $0x1a0] sm:$0xff]
        %v585 = vld [vmem:[%s315 + $0x1a8] sm:$0xff]
        %v586 = vld [vmem:[%s315 + $0x1b0] sm:$0xff]
        %v587 = vld [vmem:[%s315 + $0x1b8] sm:$0xff]
        %v588 = vld [vmem:[%s315 + $0x1c0] sm:$0xff]
        %v589 = vld [vmem:[%s315 + $0x1c8] sm:$0xff]
        %v590 = vld [vmem:[%s315 + $0x1d0] sm:$0xff]
        %v591 = vld [vmem:[%s315 + $0x1d8] sm:$0xff]
        %v592 = vld [vmem:[%s315 + $0x1e0] sm:$0xff]
        %v593 = vld [vmem:[%s315 + $0x1e8] sm:$0xff]
        %v594 = vld [vmem:[%s315 + $0x1f0] sm:$0xff]
        %v595 = vld [vmem:[%s315 + $0x1f8] sm:$0xff]
        %v596 = vld [vmem:[%s315 + $0x200] sm:$0xff]
        %v597 = vld [vmem:[%s315 + $0x208] sm:$0xff]
        %v598 = vld [vmem:[%s315 + $0x210] sm:$0xff]
        %v599 = vld [vmem:[%s315 + $0x218] sm:$0xff]
        %v600 = vld [vmem:[%s315 + $0x220] sm:$0xff]
        %v601 = vld [vmem:[%s315 + $0x228] sm:$0xff]
        %v602 = vld [vmem:[%s315 + $0x230] sm:$0xff]
        %v603 = vld [vmem:[%s315 + $0x238] sm:$0xff]
        %v604 = vld [vmem:[%s315 + $0x240] sm:$0xff]
        %v605 = vld [vmem:[%s315 + $0x248] sm:$0xff]
        %v606 = vld [vmem:[%s315 + $0x250] sm:$0xff]
        %v607 = vld [vmem:[%s315 + $0x258] sm:$0xff]
        %v608 = vld [vmem:[%s315 + $0x260] sm:$0xff]
        %v609 = vld [vmem:[%s315 + $0x268] sm:$0xff]
        %v610 = vld [vmem:[%s315 + $0x270] sm:$0xff]
        %v611 = vld [vmem:[%s315 + $0x278] sm:$0xff]
        %v612 = vld [vmem:[%s315 + $0x280] sm:$0xff]
        %v613 = vld [vmem:[%s315 + $0x288] sm:$0xff]
        %v614 = vld [vmem:[%s315 + $0x290] sm:$0xff]
        %v615 = vld [vmem:[%s315 + $0x298] sm:$0xff]
        %v616 = vld [vmem:[%s315 + $0x2a0] sm:$0xff]
        %v617 = vld [vmem:[%s315 + $0x2a8] sm:$0xff]
        %v618 = vld [vmem:[%s315 + $0x2b0] sm:$0xff]
        %v619 = vld [vmem:[%s315 + $0x2b8] sm:$0xff]
        %v620 = vld [vmem:[%s315 + $0x2c0] sm:$0xff]
        %v621 = vld [vmem:[%s315 + $0x2c8] sm:$0xff]
        %v622 = vld [vmem:[%s315 + $0x2d0] sm:$0xff]
        %v623 = vld [vmem:[%s315 + $0x2d8] sm:$0xff]
        %v624 = vld [vmem:[%s315 + $0x2e0] sm:$0xff]
        %v625 = vld [vmem:[%s315 + $0x2e8] sm:$0xff]
        %v626 = vld [vmem:[%s315 + $0x2f0] sm:$0xff]
        %v627 = vld [vmem:[%s315 + $0x2f8] sm:$0xff]
        %v628 = vld [vmem:[%s265] sm:$0xff]
        %v629 = vld [vmem:[%s265 + $0x8] sm:$0xff]
        %v630 = vld [vmem:[%s265 + $0x10] sm:$0xff]
        %v631 = vld [vmem:[%s265 + $0x18] sm:$0xff]
        %v632 = vld [vmem:[%s265 + $0x20] sm:$0xff]
        %v633 = vld [vmem:[%s265 + $0x28] sm:$0xff]
        %v634 = vld [vmem:[%s265 + $0x30] sm:$0xff]
        %v635 = vld [vmem:[%s265 + $0x38] sm:$0xff]
        %v636 = vld [vmem:[%s265 + $0x40] sm:$0xff]
        %v637 = vld [vmem:[%s265 + $0x48] sm:$0xff]
        %v638 = vld [vmem:[%s265 + $0x50] sm:$0xff]
        %v639 = vld [vmem:[%s265 + $0x58] sm:$0xff]
        %v640 = vld [vmem:[%s265 + $0x60] sm:$0xff]
        %v641 = vld [vmem:[%s265 + $0x68] sm:$0xff]
        %v642 = vld [vmem:[%s265 + $0x70] sm:$0xff]
        %v643 = vld [vmem:[%s265 + $0x78] sm:$0xff]
        %v644 = vld [vmem:[%s265 + $0x80] sm:$0xff]
        %v645 = vld [vmem:[%s265 + $0x88] sm:$0xff]
        %v646 = vld [vmem:[%s265 + $0x90] sm:$0xff]
        %v647 = vld [vmem:[%s265 + $0x98] sm:$0xff]
        %v648 = vld [vmem:[%s265 + $0xa0] sm:$0xff]
        %v649 = vld [vmem:[%s265 + $0xa8] sm:$0xff]
        %v650 = vld [vmem:[%s265 + $0xb0] sm:$0xff]
        %v651 = vld [vmem:[%s265 + $0xb8] sm:$0xff]
        %v652 = vld [vmem:[%s265 + $0xc0] sm:$0xff]
        %v653 = vld [vmem:[%s265 + $0xc8] sm:$0xff]
        %v654 = vld [vmem:[%s265 + $0xd0] sm:$0xff]
        %v655 = vld [vmem:[%s265 + $0xd8] sm:$0xff]
        %v656 = vld [vmem:[%s265 + $0xe0] sm:$0xff]
        %v657 = vld [vmem:[%s265 + $0xe8] sm:$0xff]
        %v658 = vld [vmem:[%s265 + $0xf0] sm:$0xff]
        %v659 = vld [vmem:[%s265 + $0xf8] sm:$0xff]
        %v660 = vld [vmem:[%s265 + $0x100] sm:$0xff]
        %v661 = vld [vmem:[%s265 + $0x108] sm:$0xff]
        %v662 = vld [vmem:[%s265 + $0x110] sm:$0xff]
        %v663 = vld [vmem:[%s265 + $0x118] sm:$0xff]
        %v664 = vld [vmem:[%s265 + $0x120] sm:$0xff]
        %v665 = vld [vmem:[%s265 + $0x128] sm:$0xff]
        %v666 = vld [vmem:[%s265 + $0x130] sm:$0xff]
        %v667 = vld [vmem:[%s265 + $0x138] sm:$0xff]
        %v668 = vld [vmem:[%s265 + $0x140] sm:$0xff]
        %v669 = vld [vmem:[%s265 + $0x148] sm:$0xff]
        %v670 = vld [vmem:[%s265 + $0x150] sm:$0xff]
        %v671 = vld [vmem:[%s265 + $0x158] sm:$0xff]
        %v672 = vld [vmem:[%s265 + $0x160] sm:$0xff]
        %v673 = vld [vmem:[%s265 + $0x168] sm:$0xff]
        %v674 = vld [vmem:[%s265 + $0x170] sm:$0xff]
        %v675 = vld [vmem:[%s265 + $0x178] sm:$0xff]
        %v676 = vld [vmem:[%s265 + $0x180] sm:$0xff]
        %v677 = vld [vmem:[%s265 + $0x188] sm:$0xff]
        %v678 = vld [vmem:[%s265 + $0x190] sm:$0xff]
        %v679 = vld [vmem:[%s265 + $0x198] sm:$0xff]
        %v680 = vld [vmem:[%s265 + $0x1a0] sm:$0xff]
        %v681 = vld [vmem:[%s265 + $0x1a8] sm:$0xff]
        %v682 = vld [vmem:[%s265 + $0x1b0] sm:$0xff]
        %v683 = vld [vmem:[%s265 + $0x1b8] sm:$0xff]
        %v684 = vld [vmem:[%s265 + $0x1c0] sm:$0xff]
        %v685 = vld [vmem:[%s265 + $0x1c8] sm:$0xff]
        %v686 = vld [vmem:[%s265 + $0x1d0] sm:$0xff]
        %v687 = vld [vmem:[%s265 + $0x1d8] sm:$0xff]
        %v688 = vld [vmem:[%s265 + $0x1e0] sm:$0xff]
        %v689 = vld [vmem:[%s265 + $0x1e8] sm:$0xff]
        %v690 = vld [vmem:[%s265 + $0x1f0] sm:$0xff]
        %v691 = vld [vmem:[%s265 + $0x1f8] sm:$0xff]
        %v692 = vld [vmem:[%s265 + $0x200] sm:$0xff]
        %v693 = vld [vmem:[%s265 + $0x208] sm:$0xff]
        %v694 = vld [vmem:[%s265 + $0x210] sm:$0xff]
        %v695 = vld [vmem:[%s265 + $0x218] sm:$0xff]
        %v696 = vld [vmem:[%s265 + $0x220] sm:$0xff]
        %v697 = vld [vmem:[%s265 + $0x228] sm:$0xff]
        %v698 = vld [vmem:[%s265 + $0x230] sm:$0xff]
        %v699 = vld [vmem:[%s265 + $0x238] sm:$0xff]
        %v700 = vld [vmem:[%s265 + $0x240] sm:$0xff]
        %v701 = vld [vmem:[%s265 + $0x248] sm:$0xff]
        %v702 = vld [vmem:[%s265 + $0x250] sm:$0xff]
        %v703 = vld [vmem:[%s265 + $0x258] sm:$0xff]
        %v704 = vld [vmem:[%s265 + $0x260] sm:$0xff]
        %v705 = vld [vmem:[%s265 + $0x268] sm:$0xff]
        %v706 = vld [vmem:[%s265 + $0x270] sm:$0xff]
        %v707 = vld [vmem:[%s265 + $0x278] sm:$0xff]
        %v708 = vld [vmem:[%s265 + $0x280] sm:$0xff]
        %v709 = vld [vmem:[%s265 + $0x288] sm:$0xff]
        %v710 = vld [vmem:[%s265 + $0x290] sm:$0xff]
        %v711 = vld [vmem:[%s265 + $0x298] sm:$0xff]
        %v712 = vld [vmem:[%s265 + $0x2a0] sm:$0xff]
        %v713 = vld [vmem:[%s265 + $0x2a8] sm:$0xff]
        %v714 = vld [vmem:[%s265 + $0x2b0] sm:$0xff]
        %v715 = vld [vmem:[%s265 + $0x2b8] sm:$0xff]
        %v716 = vld [vmem:[%s265 + $0x2c0] sm:$0xff]
        %v717 = vld [vmem:[%s265 + $0x2c8] sm:$0xff]
        %v718 = vld [vmem:[%s265 + $0x2d0] sm:$0xff]
        %v719 = vld [vmem:[%s265 + $0x2d8] sm:$0xff]
        %v720 = vld [vmem:[%s265 + $0x2e0] sm:$0xff]
        %v721 = vld [vmem:[%s265 + $0x2e8] sm:$0xff]
        %v722 = vld [vmem:[%s265 + $0x2f0] sm:$0xff]
        %v723 = vld [vmem:[%s265 + $0x2f8] sm:$0xff]
        %v724 = vld [vmem:[%s265 + $0x300] sm:$0xff]
        %v725 = vld [vmem:[%s265 + $0x308] sm:$0xff]
        %v726 = vld [vmem:[%s265 + $0x310] sm:$0xff]
        %v727 = vld [vmem:[%s265 + $0x318] sm:$0xff]
        %v728 = vld [vmem:[%s265 + $0x320] sm:$0xff]
        %v729 = vld [vmem:[%s265 + $0x328] sm:$0xff]
        %v730 = vld [vmem:[%s265 + $0x330] sm:$0xff]
        %v731 = vld [vmem:[%s265 + $0x338] sm:$0xff]
        %v732 = vld [vmem:[%s265 + $0x340] sm:$0xff]
        %v733 = vld [vmem:[%s265 + $0x348] sm:$0xff]
        %v734 = vld [vmem:[%s265 + $0x350] sm:$0xff]
        %v735 = vld [vmem:[%s265 + $0x358] sm:$0xff]
        %v736 = vld [vmem:[%s265 + $0x360] sm:$0xff]
        %v737 = vld [vmem:[%s265 + $0x368] sm:$0xff]
        %v738 = vld [vmem:[%s265 + $0x370] sm:$0xff]
        %v739 = vld [vmem:[%s265 + $0x378] sm:$0xff]
        %v740 = vld [vmem:[%s265 + $0x380] sm:$0xff]
        %v741 = vld [vmem:[%s265 + $0x388] sm:$0xff]
        %v742 = vld [vmem:[%s265 + $0x390] sm:$0xff]
        %v743 = vld [vmem:[%s265 + $0x398] sm:$0xff]
        %v744 = vld [vmem:[%s265 + $0x3a0] sm:$0xff]
        %v745 = vld [vmem:[%s265 + $0x3a8] sm:$0xff]
        %v746 = vld [vmem:[%s265 + $0x3b0] sm:$0xff]
        %v747 = vld [vmem:[%s265 + $0x3b8] sm:$0xff]
        %v748 = vld [vmem:[%s265 + $0x3c0] sm:$0xff]
        %v749 = vld [vmem:[%s265 + $0x3c8] sm:$0xff]
        %v750 = vld [vmem:[%s265 + $0x3d0] sm:$0xff]
        %v751 = vld [vmem:[%s265 + $0x3d8] sm:$0xff]
        %v752 = vld [vmem:[%s265 + $0x3e0] sm:$0xff]
        %v753 = vld [vmem:[%s265 + $0x3e8] sm:$0xff]
        %v754 = vld [vmem:[%s265 + $0x3f0] sm:$0xff]
        %v755 = vld [vmem:[%s265 + $0x3f8] sm:$0xff]
        %v756 = vld [vmem:[%s265 + $0x400] sm:$0xff]
        %v757 = vld [vmem:[%s265 + $0x408] sm:$0xff]
        %v758 = vld [vmem:[%s265 + $0x410] sm:$0xff]
        %v759 = vld [vmem:[%s265 + $0x418] sm:$0xff]
        %v760 = vld [vmem:[%s265 + $0x420] sm:$0xff]
        %v761 = vld [vmem:[%s265 + $0x428] sm:$0xff]
        %v762 = vld [vmem:[%s265 + $0x430] sm:$0xff]
        %v763 = vld [vmem:[%s265 + $0x438] sm:$0xff]
        %v764 = vld [vmem:[%s265 + $0x440] sm:$0xff]
        %v765 = vld [vmem:[%s265 + $0x448] sm:$0xff]
        %v766 = vld [vmem:[%s265 + $0x450] sm:$0xff]
        %v767 = vld [vmem:[%s265 + $0x458] sm:$0xff]
        %v768 = vld [vmem:[%s265 + $0x460] sm:$0xff]
        %v769 = vld [vmem:[%s265 + $0x468] sm:$0xff]
        %v770 = vld [vmem:[%s265 + $0x470] sm:$0xff]
        %v771 = vld [vmem:[%s265 + $0x478] sm:$0xff]
        %v772 = vld [vmem:[%s265 + $0x480] sm:$0xff]
        %v773 = vld [vmem:[%s265 + $0x488] sm:$0xff]
        %v774 = vld [vmem:[%s265 + $0x490] sm:$0xff]
        %v775 = vld [vmem:[%s265 + $0x498] sm:$0xff]
        %v776 = vld [vmem:[%s265 + $0x4a0] sm:$0xff]
        %v777 = vld [vmem:[%s265 + $0x4a8] sm:$0xff]
        %v778 = vld [vmem:[%s265 + $0x4b0] sm:$0xff]
        %v779 = vld [vmem:[%s265 + $0x4b8] sm:$0xff]
        %v780 = vld [vmem:[%s265 + $0x4c0] sm:$0xff]
        %v781 = vld [vmem:[%s265 + $0x4c8] sm:$0xff]
        %v782 = vld [vmem:[%s265 + $0x4d0] sm:$0xff]
        %v783 = vld [vmem:[%s265 + $0x4d8] sm:$0xff]
        %v784 = vld [vmem:[%s265 + $0x4e0] sm:$0xff]
        %v785 = vld [vmem:[%s265 + $0x4e8] sm:$0xff]
        %v786 = vld [vmem:[%s265 + $0x4f0] sm:$0xff]
        %v787 = vld [vmem:[%s265 + $0x4f8] sm:$0xff]
        %v788 = vld [vmem:[%s265 + $0x500] sm:$0xff]
        %v789 = vld [vmem:[%s265 + $0x508] sm:$0xff]
        %v790 = vld [vmem:[%s265 + $0x510] sm:$0xff]
        %v791 = vld [vmem:[%s265 + $0x518] sm:$0xff]
        %v792 = vld [vmem:[%s265 + $0x520] sm:$0xff]
        %v793 = vld [vmem:[%s265 + $0x528] sm:$0xff]
        %v794 = vld [vmem:[%s265 + $0x530] sm:$0xff]
        %v795 = vld [vmem:[%s265 + $0x538] sm:$0xff]
        %v796 = vld [vmem:[%s265 + $0x540] sm:$0xff]
        %v797 = vld [vmem:[%s265 + $0x548] sm:$0xff]
        %v798 = vld [vmem:[%s265 + $0x550] sm:$0xff]
        %v799 = vld [vmem:[%s265 + $0x558] sm:$0xff]
        %v800 = vld [vmem:[%s265 + $0x560] sm:$0xff]
        %v801 = vld [vmem:[%s265 + $0x568] sm:$0xff]
        %v802 = vld [vmem:[%s265 + $0x570] sm:$0xff]
        %v803 = vld [vmem:[%s265 + $0x578] sm:$0xff]
        %v804 = vld [vmem:[%s265 + $0x580] sm:$0xff]
        %v805 = vld [vmem:[%s265 + $0x588] sm:$0xff]
        %v806 = vld [vmem:[%s265 + $0x590] sm:$0xff]
        %v807 = vld [vmem:[%s265 + $0x598] sm:$0xff]
        %v808 = vld [vmem:[%s265 + $0x5a0] sm:$0xff]
        %v809 = vld [vmem:[%s265 + $0x5a8] sm:$0xff]
        %v810 = vld [vmem:[%s265 + $0x5b0] sm:$0xff]
        %v811 = vld [vmem:[%s265 + $0x5b8] sm:$0xff]
        %v812 = vld [vmem:[%s265 + $0x5c0] sm:$0xff]
        %v813 = vld [vmem:[%s265 + $0x5c8] sm:$0xff]
        %v814 = vld [vmem:[%s265 + $0x5d0] sm:$0xff]
        %v815 = vld [vmem:[%s265 + $0x5d8] sm:$0xff]
        %v816 = vld [vmem:[%s265 + $0x5e0] sm:$0xff]
        %v817 = vld [vmem:[%s265 + $0x5e8] sm:$0xff]
        %v818 = vld [vmem:[%s265 + $0x5f0] sm:$0xff]
        %v819 = vld [vmem:[%s265 + $0x5f8] sm:$0xff]
        %v820 = vld [vmem:[%s274] sm:$0xff]
        %v821 = vld [vmem:[%s274 + $0x8] sm:$0xff]
        %v822 = vld [vmem:[%s274 + $0x10] sm:$0xff]
        %v823 = vld [vmem:[%s274 + $0x18] sm:$0xff]
        %v824 = vld [vmem:[%s274 + $0x20] sm:$0xff]
        %v825 = vld [vmem:[%s274 + $0x28] sm:$0xff]
        %v826 = vld [vmem:[%s274 + $0x30] sm:$0xff]
        %v827 = vld [vmem:[%s274 + $0x38] sm:$0xff]
        %v828 = vld [vmem:[%s274 + $0x40] sm:$0xff]
        %v829 = vld [vmem:[%s274 + $0x48] sm:$0xff]
        %v830 = vld [vmem:[%s274 + $0x50] sm:$0xff]
        %v831 = vld [vmem:[%s274 + $0x58] sm:$0xff]
        %v832 = vld [vmem:[%s274 + $0x60] sm:$0xff]
        %v833 = vld [vmem:[%s274 + $0x68] sm:$0xff]
        %v834 = vld [vmem:[%s274 + $0x70] sm:$0xff]
        %v835 = vld [vmem:[%s274 + $0x78] sm:$0xff]
        %v836 = vld [vmem:[%s274 + $0x80] sm:$0xff]
        %v837 = vld [vmem:[%s274 + $0x88] sm:$0xff]
        %v838 = vld [vmem:[%s274 + $0x90] sm:$0xff]
        %v839 = vld [vmem:[%s274 + $0x98] sm:$0xff]
        %v840 = vld [vmem:[%s274 + $0xa0] sm:$0xff]
        %v841 = vld [vmem:[%s274 + $0xa8] sm:$0xff]
        %v842 = vld [vmem:[%s274 + $0xb0] sm:$0xff]
        %v843 = vld [vmem:[%s274 + $0xb8] sm:$0xff]
        %v844 = vld [vmem:[%s274 + $0xc0] sm:$0xff]
        %v845 = vld [vmem:[%s274 + $0xc8] sm:$0xff]
        %v846 = vld [vmem:[%s274 + $0xd0] sm:$0xff]
        %v847 = vld [vmem:[%s274 + $0xd8] sm:$0xff]
        %v848 = vld [vmem:[%s274 + $0xe0] sm:$0xff]
        %v849 = vld [vmem:[%s274 + $0xe8] sm:$0xff]
        %v850 = vld [vmem:[%s274 + $0xf0] sm:$0xff]
        %v851 = vld [vmem:[%s274 + $0xf8] sm:$0xff]
        %v852 = vld [vmem:[%s274 + $0x100] sm:$0xff]
        %v853 = vld [vmem:[%s274 + $0x108] sm:$0xff]
        %v854 = vld [vmem:[%s274 + $0x110] sm:$0xff]
        %v855 = vld [vmem:[%s274 + $0x118] sm:$0xff]
        %v856 = vld [vmem:[%s274 + $0x120] sm:$0xff]
        %v857 = vld [vmem:[%s274 + $0x128] sm:$0xff]
        %v858 = vld [vmem:[%s274 + $0x130] sm:$0xff]
        %v859 = vld [vmem:[%s274 + $0x138] sm:$0xff]
        %v860 = vld [vmem:[%s274 + $0x140] sm:$0xff]
        %v861 = vld [vmem:[%s274 + $0x148] sm:$0xff]
        %v862 = vld [vmem:[%s274 + $0x150] sm:$0xff]
        %v863 = vld [vmem:[%s274 + $0x158] sm:$0xff]
        %v864 = vld [vmem:[%s274 + $0x160] sm:$0xff]
        %v865 = vld [vmem:[%s274 + $0x168] sm:$0xff]
        %v866 = vld [vmem:[%s274 + $0x170] sm:$0xff]
        %v867 = vld [vmem:[%s274 + $0x178] sm:$0xff]
        %v868 = vld [vmem:[%s274 + $0x180] sm:$0xff]
        %v869 = vld [vmem:[%s274 + $0x188] sm:$0xff]
        %v870 = vld [vmem:[%s274 + $0x190] sm:$0xff]
        %v871 = vld [vmem:[%s274 + $0x198] sm:$0xff]
        %v872 = vld [vmem:[%s274 + $0x1a0] sm:$0xff]
        %v873 = vld [vmem:[%s274 + $0x1a8] sm:$0xff]
        %v874 = vld [vmem:[%s274 + $0x1b0] sm:$0xff]
        %v875 = vld [vmem:[%s274 + $0x1b8] sm:$0xff]
        %v876 = vld [vmem:[%s274 + $0x1c0] sm:$0xff]
        %v877 = vld [vmem:[%s274 + $0x1c8] sm:$0xff]
        %v878 = vld [vmem:[%s274 + $0x1d0] sm:$0xff]
        %v879 = vld [vmem:[%s274 + $0x1d8] sm:$0xff]
        %v880 = vld [vmem:[%s274 + $0x1e0] sm:$0xff]
        %v881 = vld [vmem:[%s274 + $0x1e8] sm:$0xff]
        %v882 = vld [vmem:[%s274 + $0x1f0] sm:$0xff]
        %v883 = vld [vmem:[%s274 + $0x1f8] sm:$0xff]
        %v884 = vld [vmem:[%s274 + $0x200] sm:$0xff]
        %v885 = vld [vmem:[%s274 + $0x208] sm:$0xff]
        %v886 = vld [vmem:[%s274 + $0x210] sm:$0xff]
        %v887 = vld [vmem:[%s274 + $0x218] sm:$0xff]
        %v888 = vld [vmem:[%s274 + $0x220] sm:$0xff]
        %v889 = vld [vmem:[%s274 + $0x228] sm:$0xff]
        %v890 = vld [vmem:[%s274 + $0x230] sm:$0xff]
        %v891 = vld [vmem:[%s274 + $0x238] sm:$0xff]
        %v892 = vld [vmem:[%s274 + $0x240] sm:$0xff]
        %v893 = vld [vmem:[%s274 + $0x248] sm:$0xff]
        %v894 = vld [vmem:[%s274 + $0x250] sm:$0xff]
        %v895 = vld [vmem:[%s274 + $0x258] sm:$0xff]
        %v896 = vld [vmem:[%s274 + $0x260] sm:$0xff]
        %v897 = vld [vmem:[%s274 + $0x268] sm:$0xff]
        %v898 = vld [vmem:[%s274 + $0x270] sm:$0xff]
        %v899 = vld [vmem:[%s274 + $0x278] sm:$0xff]
        %v900 = vld [vmem:[%s274 + $0x280] sm:$0xff]
        %v901 = vld [vmem:[%s274 + $0x288] sm:$0xff]
        %v902 = vld [vmem:[%s274 + $0x290] sm:$0xff]
        %v903 = vld [vmem:[%s274 + $0x298] sm:$0xff]
        %v904 = vld [vmem:[%s274 + $0x2a0] sm:$0xff]
        %v905 = vld [vmem:[%s274 + $0x2a8] sm:$0xff]
        %v906 = vld [vmem:[%s274 + $0x2b0] sm:$0xff]
        %v907 = vld [vmem:[%s274 + $0x2b8] sm:$0xff]
        %v908 = vld [vmem:[%s274 + $0x2c0] sm:$0xff]
        %v909 = vld [vmem:[%s274 + $0x2c8] sm:$0xff]
        %v910 = vld [vmem:[%s274 + $0x2d0] sm:$0xff]
        %v911 = vld [vmem:[%s274 + $0x2d8] sm:$0xff]
        %v912 = vld [vmem:[%s274 + $0x2e0] sm:$0xff]
        %v913 = vld [vmem:[%s274 + $0x2e8] sm:$0xff]
        %v914 = vld [vmem:[%s274 + $0x2f0] sm:$0xff]
        %v915 = vld [vmem:[%s274 + $0x2f8] sm:$0xff]
        %v916 = vld [vmem:[%s274 + $0x300] sm:$0xff]
        %v917 = vld [vmem:[%s274 + $0x308] sm:$0xff]
        %v918 = vld [vmem:[%s274 + $0x310] sm:$0xff]
        %v919 = vld [vmem:[%s274 + $0x318] sm:$0xff]
        %v920 = vld [vmem:[%s274 + $0x320] sm:$0xff]
        %v921 = vld [vmem:[%s274 + $0x328] sm:$0xff]
        %v922 = vld [vmem:[%s274 + $0x330] sm:$0xff]
        %v923 = vld [vmem:[%s274 + $0x338] sm:$0xff]
        %v924 = vld [vmem:[%s274 + $0x340] sm:$0xff]
        %v925 = vld [vmem:[%s274 + $0x348] sm:$0xff]
        %v926 = vld [vmem:[%s274 + $0x350] sm:$0xff]
        %v927 = vld [vmem:[%s274 + $0x358] sm:$0xff]
        %v928 = vld [vmem:[%s274 + $0x360] sm:$0xff]
        %v929 = vld [vmem:[%s274 + $0x368] sm:$0xff]
        %v930 = vld [vmem:[%s274 + $0x370] sm:$0xff]
        %v931 = vld [vmem:[%s274 + $0x378] sm:$0xff]
        %v932 = vld [vmem:[%s274 + $0x380] sm:$0xff]
        %v933 = vld [vmem:[%s274 + $0x388] sm:$0xff]
        %v934 = vld [vmem:[%s274 + $0x390] sm:$0xff]
        %v935 = vld [vmem:[%s274 + $0x398] sm:$0xff]
        %v936 = vld [vmem:[%s274 + $0x3a0] sm:$0xff]
        %v937 = vld [vmem:[%s274 + $0x3a8] sm:$0xff]
        %v938 = vld [vmem:[%s274 + $0x3b0] sm:$0xff]
        %v939 = vld [vmem:[%s274 + $0x3b8] sm:$0xff]
        %v940 = vld [vmem:[%s274 + $0x3c0] sm:$0xff]
        %v941 = vld [vmem:[%s274 + $0x3c8] sm:$0xff]
        %v942 = vld [vmem:[%s274 + $0x3d0] sm:$0xff]
        %v943 = vld [vmem:[%s274 + $0x3d8] sm:$0xff]
        %v944 = vld [vmem:[%s274 + $0x3e0] sm:$0xff]
        %v945 = vld [vmem:[%s274 + $0x3e8] sm:$0xff]
        %v946 = vld [vmem:[%s274 + $0x3f0] sm:$0xff]
        %v947 = vld [vmem:[%s274 + $0x3f8] sm:$0xff]
        %948 = vmatprep.subr.mxu0 %v821
        %949 = vmatpush1.msra.mxu0 %v820
        %950 = vmatprep.subr.mxu0 %v823
        %951 = vmatpush1.msra.mxu0 %v822
        %952 = vmatprep.subr.mxu0 %v825
        %953 = vmatpush1.msra.mxu0 %v824
        %954 = vmatprep.subr.mxu0 %v827
        %955 = vmatpush1.msra.mxu0 %v826
        %956 = vmatprep.subr.mxu0 %v829
        %957 = vmatpush1.msra.mxu0 %v828
        %958 = vmatprep.subr.mxu0 %v831
        %959 = vmatpush1.msra.mxu0 %v830
        %960 = vmatprep.subr.mxu0 %v833
        %961 = vmatpush1.msra.mxu0 %v832
        %962 = vmatprep.subr.mxu0 %v835
        %963 = vmatpush1.msra.mxu0 %v834
        %964 = vmatprep.subr.mxu0 %v837
        %965 = vmatpush1.msra.mxu0 %v836
        %966 = vmatprep.subr.mxu0 %v839
        %967 = vmatpush1.msra.mxu0 %v838
        %968 = vmatprep.subr.mxu0 %v841
        %969 = vmatpush1.msra.mxu0 %v840
        %970 = vmatprep.subr.mxu0 %v843
        %971 = vmatpush1.msra.mxu0 %v842
        %972 = vmatprep.subr.mxu0 %v845
        %973 = vmatpush1.msra.mxu0 %v844
        %974 = vmatprep.subr.mxu0 %v847
        %975 = vmatpush1.msra.mxu0 %v846
        %976 = vmatprep.subr.mxu0 %v849
        %977 = vmatpush1.msra.mxu0 %v848
        %978 = vmatprep.subr.mxu0 %v851
        %979 = vmatpush1.msra.mxu0 %v850
        %980 = vmatprep.subr.mxu0 %v853
        %981 = vmatpush1.msra.mxu0 %v852
        %982 = vmatprep.subr.mxu0 %v855
        %983 = vmatpush1.msra.mxu0 %v854
        %984 = vmatprep.subr.mxu0 %v857
        %985 = vmatpush1.msra.mxu0 %v856
        %986 = vmatprep.subr.mxu0 %v859
        %987 = vmatpush1.msra.mxu0 %v858
        %988 = vmatprep.subr.mxu0 %v861
        %989 = vmatpush1.msra.mxu0 %v860
        %990 = vmatprep.subr.mxu0 %v863
        %991 = vmatpush1.msra.mxu0 %v862
        %992 = vmatprep.subr.mxu0 %v865
        %993 = vmatpush1.msra.mxu0 %v864
        %994 = vmatprep.subr.mxu0 %v867
        %995 = vmatpush1.msra.mxu0 %v866
        %996 = vmatprep.subr.mxu0 %v869
        %997 = vmatpush1.msra.mxu0 %v868
        %998 = vmatprep.subr.mxu0 %v871
        %999 = vmatpush1.msra.mxu0 %v870
        %1000 = vmatprep.subr.mxu0 %v873
        %1001 = vmatpush1.msra.mxu0 %v872
        %1002 = vmatprep.subr.mxu0 %v875
        %1003 = vmatpush1.msra.mxu0 %v874
        %1004 = vmatprep.subr.mxu0 %v877
        %1005 = vmatpush1.msra.mxu0 %v876
        %1006 = vmatprep.subr.mxu0 %v879
        %1007 = vmatpush1.msra.mxu0 %v878
        %1008 = vmatprep.subr.mxu0 %v881
        %1009 = vmatpush1.msra.mxu0 %v880
        %1010 = vmatprep.subr.mxu0 %v883
        %1011 = vmatpush1.msra.mxu0 %v882
        %1012 = vmatprep.mubr.f32.mxu0 %v629
        %1013 = vmatmul.mubr.f32.gmra.mrb[0].mxu0 %v628
        %v1014 = vpop.f32.mrb[0].mxu0
        %v1015 = vadd.f32 0.0, %v1014
        %v1016 = vpop.f32.mrb[0].mxu0
        %v1017 = vadd.f32 0.0, %v1016
        %1018 = vmatprep.mubr.f32.mxu0 %v633
        %1019 = vmatmul.mubr.f32.gmra.mrb[0].mxu0 %v632
        %v1020 = vpop.f32.mrb[0].mxu0
        %v1021 = vadd.f32 0.0, %v1020
        %v1022 = vpop.f32.mrb[0].mxu0
        %v1023 = vadd.f32 0.0, %v1022
        %1024 = vmatprep.mubr.f32.mxu0 %v637
        %1025 = vmatmul.mubr.f32.gmra.mrb[0].mxu0 %v636
        %v1026 = vpop.f32.mrb[0].mxu0
        %v1027 = vadd.f32 0.0, %v1026
        %v1028 = vpop.f32.mrb[0].mxu0
        %v1029 = vadd.f32 0.0, %v1028
        %1030 = vmatprep.mubr.f32.mxu0 %v641
        %1031 = vmatmul.mubr.f32.gmra.mrb[0].mxu0 %v640
        %v1032 = vpop.f32.mrb[0].mxu0
        %v1033 = vadd.f32 0.0, %v1032
        %v1034 = vpop.f32.mrb[0].mxu0
        %v1035 = vadd.f32 0.0, %v1034
        %1036 = vmatprep.mubr.f32.mxu0 %v645
        %1037 = vmatmul.mubr.f32.gmra.mrb[0].mxu0 %v644
        %v1038 = vpop.f32.mrb[0].mxu0
        %v1039 = vadd.f32 0.0, %v1038
        %v1040 = vpop.f32.mrb[0].mxu0
        %v1041 = vadd.f32 0.0, %v1040
        %1042 = vmatprep.mubr.f32.mxu0 %v649
        %1043 = vmatmul.mubr.f32.gmra.mrb[0].mxu0 %v648
        %v1044 = vpop.f32.mrb[0].mxu0
        %v1045 = vadd.f32 0.0, %v1044
        %v1046 = vpop.f32.mrb[0].mxu0
        %v1047 = vadd.f32 0.0, %v1046
        %1048 = vmatprep.mubr.f32.mxu0 %v653
        %1049 = vmatmul.mubr.f32.gmra.mrb[0].mxu0 %v652
        %v1050 = vpop.f32.mrb[0].mxu0
        %v1051 = vadd.f32 0.0, %v1050
        %v1052 = vpop.f32.mrb[0].mxu0
        %v1053 = vadd.f32 0.0, %v1052
        %1054 = vmatprep.mubr.f32.mxu0 %v657
        %1055 = vmatmul.mubr.f32.gmra.mrb[0].mxu0 %v656
        %v1056 = vpop.f32.mrb[0].mxu0
        %v1057 = vadd.f32 0.0, %v1056
        %v1058 = vpop.f32.mrb[0].mxu0
        %v1059 = vadd.f32 0.0, %v1058
        %1060 = vmatprep.mubr.f32.mxu0 %v661
        %1061 = vmatmul.mubr.f32.gmra.mrb[0].mxu0 %v660
        %v1062 = vpop.f32.mrb[0].mxu0
        %v1063 = vadd.f32 0.0, %v1062
        %v1064 = vpop.f32.mrb[0].mxu0
        %v1065 = vadd.f32 0.0, %v1064
        %1066 = vmatprep.mubr.f32.mxu0 %v665
        %1067 = vmatmul.mubr.f32.gmra.mrb[0].mxu0 %v664
        %v1068 = vpop.f32.mrb[0].mxu0
        %v1069 = vadd.f32 0.0, %v1068
        %v1070 = vpop.f32.mrb[0].mxu0
        %v1071 = vadd.f32 0.0, %v1070
        %1072 = vmatprep.mubr.f32.mxu0 %v669
        %1073 = vmatmul.mubr.f32.gmra.mrb[0].mxu0 %v668
        %v1074 = vpop.f32.mrb[0].mxu0
        %v1075 = vadd.f32 0.0, %v1074
        %v1076 = vpop.f32.mrb[0].mxu0
        %v1077 = vadd.f32 0.0, %v1076
        %1078 = vmatprep.mubr.f32.mxu0 %v673
        %1079 = vmatmul.mubr.f32.gmra.mrb[0].mxu0 %v672
        %v1080 = vpop.f32.mrb[0].mxu0
        %v1081 = vadd.f32 0.0, %v1080
        %v1082 = vpop.f32.mrb[0].mxu0
        %v1083 = vadd.f32 0.0, %v1082
        %1084 = vmatprep.mubr.f32.mxu0 %v677
        %1085 = vmatmul.mubr.f32.gmra.mrb[0].mxu0 %v676
        %v1086 = vpop.f32.mrb[0].mxu0
        %v1087 = vadd.f32 0.0, %v1086
        %v1088 = vpop.f32.mrb[0].mxu0
        %v1089 = vadd.f32 0.0, %v1088
        %1090 = vmatprep.mubr.f32.mxu0 %v681
        %1091 = vmatmul.mubr.f32.gmra.mrb[0].mxu0 %v680
        %v1092 = vpop.f32.mrb[0].mxu0
        %v1093 = vadd.f32 0.0, %v1092
        %v1094 = vpop.f32.mrb[0].mxu0
        %v1095 = vadd.f32 0.0, %v1094
        %1096 = vmatprep.mubr.f32.mxu0 %v685
        %1097 = vmatmul.mubr.f32.gmra.mrb[0].mxu0 %v684
        %v1098 = vpop.f32.mrb[0].mxu0
        %v1099 = vadd.f32 0.0, %v1098
        %v1100 = vpop.f32.mrb[0].mxu0
        %v1101 = vadd.f32 0.0, %v1100
        %1102 = vmatprep.mubr.f32.mxu0 %v689
        %1103 = vmatmul.mubr.f32.gmra.mrb[0].mxu0 %v688
        %v1104 = vpop.f32.mrb[0].mxu0
        %v1105 = vadd.f32 0.0, %v1104
        %v1106 = vpop.f32.mrb[0].mxu0
        %v1107 = vadd.f32 0.0, %v1106
        %1108 = vmatprep.mubr.f32.mxu0 %v693
        %1109 = vmatmul.mubr.f32.gmra.mrb[0].mxu0 %v692
        %v1110 = vpop.f32.mrb[0].mxu0
        %v1111 = vadd.f32 0.0, %v1110
        %v1112 = vpop.f32.mrb[0].mxu0
        %v1113 = vadd.f32 0.0, %v1112
        %1114 = vmatprep.mubr.f32.mxu0 %v697
        %1115 = vmatmul.mubr.f32.gmra.mrb[0].mxu0 %v696
        %v1116 = vpop.f32.mrb[0].mxu0
        %v1117 = vadd.f32 0.0, %v1116
        %v1118 = vpop.f32.mrb[0].mxu0
        %v1119 = vadd.f32 0.0, %v1118
        %1120 = vmatprep.mubr.f32.mxu0 %v701
        %1121 = vmatmul.mubr.f32.gmra.mrb[0].mxu0 %v700
        %v1122 = vpop.f32.mrb[0].mxu0
        %v1123 = vadd.f32 0.0, %v1122
        %v1124 = vpop.f32.mrb[0].mxu0
        %v1125 = vadd.f32 0.0, %v1124
        %1126 = vmatprep.mubr.f32.mxu0 %v705
        %1127 = vmatmul.mubr.f32.gmra.mrb[0].mxu0 %v704
        %v1128 = vpop.f32.mrb[0].mxu0
        %v1129 = vadd.f32 0.0, %v1128
        %v1130 = vpop.f32.mrb[0].mxu0
        %v1131 = vadd.f32 0.0, %v1130
        %1132 = vmatprep.mubr.f32.mxu0 %v709
        %1133 = vmatmul.mubr.f32.gmra.mrb[0].mxu0 %v708
        %v1134 = vpop.f32.mrb[0].mxu0
        %v1135 = vadd.f32 0.0, %v1134
        %v1136 = vpop.f32.mrb[0].mxu0
        %v1137 = vadd.f32 0.0, %v1136
        %1138 = vmatprep.mubr.f32.mxu0 %v713
        %1139 = vmatmul.mubr.f32.gmra.mrb[0].mxu0 %v712
        %v1140 = vpop.f32.mrb[0].mxu0
        %v1141 = vadd.f32 0.0, %v1140
        %v1142 = vpop.f32.mrb[0].mxu0
        %v1143 = vadd.f32 0.0, %v1142
        %1144 = vmatprep.mubr.f32.mxu0 %v717
        %1145 = vmatmul.mubr.f32.gmra.mrb[0].mxu0 %v716
        %v1146 = vpop.f32.mrb[0].mxu0
        %v1147 = vadd.f32 0.0, %v1146
        %v1148 = vpop.f32.mrb[0].mxu0
        %v1149 = vadd.f32 0.0, %v1148
        %1150 = vmatprep.mubr.f32.mxu0 %v721
        %1151 = vmatmul.mubr.f32.gmra.mrb[0].mxu0 %v720
        %v1152 = vpop.f32.mrb[0].mxu0
        %v1153 = vadd.f32 0.0, %v1152
        %v1154 = vpop.f32.mrb[0].mxu0
        %v1155 = vadd.f32 0.0, %v1154
        %1156 = vmatprep.mubr.f32.mxu0 %v725
        %1157 = vmatmul.mubr.f32.gmra.mrb[0].mxu0 %v724
        %v1158 = vpop.f32.mrb[0].mxu0
        %v1159 = vadd.f32 0.0, %v1158
        %v1160 = vpop.f32.mrb[0].mxu0
        %v1161 = vadd.f32 0.0, %v1160
        %1162 = vmatprep.mubr.f32.mxu0 %v729
        %1163 = vmatmul.mubr.f32.gmra.mrb[0].mxu0 %v728
        %v1164 = vpop.f32.mrb[0].mxu0
        %v1165 = vadd.f32 0.0, %v1164
        %v1166 = vpop.f32.mrb[0].mxu0
        %v1167 = vadd.f32 0.0, %v1166
        %1168 = vmatprep.mubr.f32.mxu0 %v733
        %1169 = vmatmul.mubr.f32.gmra.mrb[0].mxu0 %v732
        %v1170 = vpop.f32.mrb[0].mxu0
        %v1171 = vadd.f32 0.0, %v1170
        %v1172 = vpop.f32.mrb[0].mxu0
        %v1173 = vadd.f32 0.0, %v1172
        %1174 = vmatprep.mubr.f32.mxu0 %v737
        %1175 = vmatmul.mubr.f32.gmra.mrb[0].mxu0 %v736
        %v1176 = vpop.f32.mrb[0].mxu0
        %v1177 = vadd.f32 0.0, %v1176
        %v1178 = vpop.f32.mrb[0].mxu0
        %v1179 = vadd.f32 0.0, %v1178
        %1180 = vmatprep.mubr.f32.mxu0 %v741
        %1181 = vmatmul.mubr.f32.gmra.mrb[0].mxu0 %v740
        %v1182 = vpop.f32.mrb[0].mxu0
        %v1183 = vadd.f32 0.0, %v1182
        %v1184 = vpop.f32.mrb[0].mxu0
        %v1185 = vadd.f32 0.0, %v1184
        %1186 = vmatprep.mubr.f32.mxu0 %v745
        %1187 = vmatmul.mubr.f32.gmra.mrb[0].mxu0 %v744
        %v1188 = vpop.f32.mrb[0].mxu0
        %v1189 = vadd.f32 0.0, %v1188
        %v1190 = vpop.f32.mrb[0].mxu0
        %v1191 = vadd.f32 0.0, %v1190
        %1192 = vmatprep.mubr.f32.mxu0 %v749
        %1193 = vmatmul.mubr.f32.gmra.mrb[0].mxu0 %v748
        %v1194 = vpop.f32.mrb[0].mxu0
        %v1195 = vadd.f32 0.0, %v1194
        %v1196 = vpop.f32.mrb[0].mxu0
        %v1197 = vadd.f32 0.0, %v1196
        %1198 = vmatprep.mubr.f32.mxu0 %v753
        %1199 = vmatmul.mubr.f32.gmra.mrb[0].mxu0 %v752
        %v1200 = vpop.f32.mrb[0].mxu0
        %v1201 = vadd.f32 0.0, %v1200
        %v1202 = vpop.f32.mrb[0].mxu0
        %v1203 = vadd.f32 0.0, %v1202
        %1204 = vmatprep.mubr.f32.mxu0 %v757
        %1205 = vmatmul.mubr.f32.gmra.mrb[0].mxu0 %v756
        %v1206 = vpop.f32.mrb[0].mxu0
        %v1207 = vadd.f32 0.0, %v1206
        %v1208 = vpop.f32.mrb[0].mxu0
        %v1209 = vadd.f32 0.0, %v1208
        %1210 = vmatprep.mubr.f32.mxu0 %v761
        %1211 = vmatmul.mubr.f32.gmra.mrb[0].mxu0 %v760
        %v1212 = vpop.f32.mrb[0].mxu0
        %v1213 = vadd.f32 0.0, %v1212
        %v1214 = vpop.f32.mrb[0].mxu0
        %v1215 = vadd.f32 0.0, %v1214
        %1216 = vmatprep.mubr.f32.mxu0 %v765
        %1217 = vmatmul.mubr.f32.gmra.mrb[0].mxu0 %v764
        %v1218 = vpop.f32.mrb[0].mxu0
        %v1219 = vadd.f32 0.0, %v1218
        %v1220 = vpop.f32.mrb[0].mxu0
        %v1221 = vadd.f32 0.0, %v1220
        %1222 = vmatprep.mubr.f32.mxu0 %v769
        %1223 = vmatmul.mubr.f32.gmra.mrb[0].mxu0 %v768
        %v1224 = vpop.f32.mrb[0].mxu0
        %v1225 = vadd.f32 0.0, %v1224
        %v1226 = vpop.f32.mrb[0].mxu0
        %v1227 = vadd.f32 0.0, %v1226
        %1228 = vmatprep.mubr.f32.mxu0 %v773
        %1229 = vmatmul.mubr.f32.gmra.mrb[0].mxu0 %v772
        %v1230 = vpop.f32.mrb[0].mxu0
        %v1231 = vadd.f32 0.0, %v1230
        %v1232 = vpop.f32.mrb[0].mxu0
        %v1233 = vadd.f32 0.0, %v1232
        %1234 = vmatprep.mubr.f32.mxu0 %v777
        %1235 = vmatmul.mubr.f32.gmra.mrb[0].mxu0 %v776
        %v1236 = vpop.f32.mrb[0].mxu0
        %v1237 = vadd.f32 0.0, %v1236
        %v1238 = vpop.f32.mrb[0].mxu0
        %v1239 = vadd.f32 0.0, %v1238
        %1240 = vmatprep.mubr.f32.mxu0 %v781
        %1241 = vmatmul.mubr.f32.gmra.mrb[0].mxu0 %v780
        %v1242 = vpop.f32.mrb[0].mxu0
        %v1243 = vadd.f32 0.0, %v1242
        %v1244 = vpop.f32.mrb[0].mxu0
        %v1245 = vadd.f32 0.0, %v1244
        %1246 = vmatprep.mubr.f32.mxu0 %v785
        %1247 = vmatmul.mubr.f32.gmra.mrb[0].mxu0 %v784
        %v1248 = vpop.f32.mrb[0].mxu0
        %v1249 = vadd.f32 0.0, %v1248
        %v1250 = vpop.f32.mrb[0].mxu0
        %v1251 = vadd.f32 0.0, %v1250
        %1252 = vmatprep.mubr.f32.mxu0 %v789
        %1253 = vmatmul.mubr.f32.gmra.mrb[0].mxu0 %v788
        %v1254 = vpop.f32.mrb[0].mxu0
        %v1255 = vadd.f32 0.0, %v1254
        %v1256 = vpop.f32.mrb[0].mxu0
        %v1257 = vadd.f32 0.0, %v1256
        %1258 = vmatprep.mubr.f32.mxu0 %v793
        %1259 = vmatmul.mubr.f32.gmra.mrb[0].mxu0 %v792
        %v1260 = vpop.f32.mrb[0].mxu0
        %v1261 = vadd.f32 0.0, %v1260
        %v1262 = vpop.f32.mrb[0].mxu0
        %v1263 = vadd.f32 0.0, %v1262
        %1264 = vmatprep.mubr.f32.mxu0 %v797
        %1265 = vmatmul.mubr.f32.gmra.mrb[0].mxu0 %v796
        %v1266 = vpop.f32.mrb[0].mxu0
        %v1267 = vadd.f32 0.0, %v1266
        %v1268 = vpop.f32.mrb[0].mxu0
        %v1269 = vadd.f32 0.0, %v1268
        %1270 = vmatprep.mubr.f32.mxu0 %v801
        %1271 = vmatmul.mubr.f32.gmra.mrb[0].mxu0 %v800
        %v1272 = vpop.f32.mrb[0].mxu0
        %v1273 = vadd.f32 0.0, %v1272
        %v1274 = vpop.f32.mrb[0].mxu0
        %v1275 = vadd.f32 0.0, %v1274
        %1276 = vmatprep.mubr.f32.mxu0 %v805
        %1277 = vmatmul.mubr.f32.gmra.mrb[0].mxu0 %v804
        %v1278 = vpop.f32.mrb[0].mxu0
        %v1279 = vadd.f32 0.0, %v1278
        %v1280 = vpop.f32.mrb[0].mxu0
        %v1281 = vadd.f32 0.0, %v1280
        %1282 = vmatprep.mubr.f32.mxu0 %v809
        %1283 = vmatmul.mubr.f32.gmra.mrb[0].mxu0 %v808
        %v1284 = vpop.f32.mrb[0].mxu0
        %v1285 = vadd.f32 0.0, %v1284
        %v1286 = vpop.f32.mrb[0].mxu0
        %v1287 = vadd.f32 0.0, %v1286
        %1288 = vmatprep.mubr.f32.mxu0 %v813
        %1289 = vmatmul.mubr.f32.gmra.mrb[0].mxu0 %v812
        %v1290 = vpop.f32.mrb[0].mxu0
        %v1291 = vadd.f32 0.0, %v1290
        %v1292 = vpop.f32.mrb[0].mxu0
        %v1293 = vadd.f32 0.0, %v1292
        %1294 = vmatprep.mubr.f32.mxu0 %v817
        %1295 = vmatmul.mubr.f32.gmra.mrb[0].mxu0 %v816
        %v1296 = vpop.f32.mrb[0].mxu0
        %v1297 = vadd.f32 0.0, %v1296
        %v1298 = vpop.f32.mrb[0].mxu0
        %v1299 = vadd.f32 0.0, %v1298
        %1300 = vdwg.mxu0
        %1301 = vmatprep.subr.mxu0 %v885
        %1302 = vmatpush1.msra.mxu0 %v884
        %1303 = vmatprep.subr.mxu0 %v887
        %1304 = vmatpush1.msra.mxu0 %v886
        %1305 = vmatprep.subr.mxu0 %v889
        %1306 = vmatpush1.msra.mxu0 %v888
        %1307 = vmatprep.subr.mxu0 %v891
        %1308 = vmatpush1.msra.mxu0 %v890
        %1309 = vmatprep.subr.mxu0 %v893
        %1310 = vmatpush1.msra.mxu0 %v892
        %1311 = vmatprep.subr.mxu0 %v895
        %1312 = vmatpush1.msra.mxu0 %v894
        %1313 = vmatprep.subr.mxu0 %v897
        %1314 = vmatpush1.msra.mxu0 %v896
        %1315 = vmatprep.subr.mxu0 %v899
        %1316 = vmatpush1.msra.mxu0 %v898
        %1317 = vmatprep.subr.mxu0 %v901
        %1318 = vmatpush1.msra.mxu0 %v900
        %1319 = vmatprep.subr.mxu0 %v903
        %1320 = vmatpush1.msra.mxu0 %v902
        %1321 = vmatprep.subr.mxu0 %v905
        %1322 = vmatpush1.msra.mxu0 %v904
        %1323 = vmatprep.subr.mxu0 %v907
        %1324 = vmatpush1.msra.mxu0 %v906
        %1325 = vmatprep.subr.mxu0 %v909
        %1326 = vmatpush1.msra.mxu0 %v908
        %1327 = vmatprep.subr.mxu0 %v911
        %1328 = vmatpush1.msra.mxu0 %v910
        %1329 = vmatprep.subr.mxu0 %v913
        %1330 = vmatpush1.msra.mxu0 %v912
        %1331 = vmatprep.subr.mxu0 %v915
        %1332 = vmatpush1.msra.mxu0 %v914
        %1333 = vmatprep.subr.mxu0 %v917
        %1334 = vmatpush1.msra.mxu0 %v916
        %1335 = vmatprep.subr.mxu0 %v919
        %1336 = vmatpush1.msra.mxu0 %v918
        %1337 = vmatprep.subr.mxu0 %v921
        %1338 = vmatpush1.msra.mxu0 %v920
        %1339 = vmatprep.subr.mxu0 %v923
        %1340 = vmatpush1.msra.mxu0 %v922
        %1341 = vmatprep.subr.mxu0 %v925
        %1342 = vmatpush1.msra.mxu0 %v924
        %1343 = vmatprep.subr.mxu0 %v927
        %1344 = vmatpush1.msra.mxu0 %v926
        %1345 = vmatprep.subr.mxu0 %v929
        %1346 = vmatpush1.msra.mxu0 %v928
        %1347 = vmatprep.subr.mxu0 %v931
        %1348 = vmatpush1.msra.mxu0 %v930
        %1349 = vmatprep.subr.mxu0 %v933
        %1350 = vmatpush1.msra.mxu0 %v932
        %1351 = vmatprep.subr.mxu0 %v935
        %1352 = vmatpush1.msra.mxu0 %v934
        %1353 = vmatprep.subr.mxu0 %v937
        %1354 = vmatpush1.msra.mxu0 %v936
        %1355 = vmatprep.subr.mxu0 %v939
        %1356 = vmatpush1.msra.mxu0 %v938
        %1357 = vmatprep.subr.mxu0 %v941
        %1358 = vmatpush1.msra.mxu0 %v940
        %1359 = vmatprep.subr.mxu0 %v943
        %1360 = vmatpush1.msra.mxu0 %v942
        %1361 = vmatprep.subr.mxu0 %v945
        %1362 = vmatpush1.msra.mxu0 %v944
        %1363 = vmatprep.subr.mxu0 %v947
        %1364 = vmatpush1.msra.mxu0 %v946
        %1365 = vmatprep.mubr.f32.mxu0 %v631
        %1366 = vmatmul.mubr.f32.gmra.mrb[0].mxu0 %v630
        %v1367 = vpop.f32.mrb[0].mxu0
        %v1368 = vadd.f32 %v1015, %v1367
        %v1369 = vpop.f32.mrb[0].mxu0
        %v1370 = vadd.f32 %v1017, %v1369
        %1371 = vmatprep.mubr.f32.mxu0 %v635
        %1372 = vmatmul.mubr.f32.gmra.mrb[0].mxu0 %v634
        %v1373 = vpop.f32.mrb[0].mxu0
        %v1374 = vadd.f32 %v1021, %v1373
        %v1375 = vpop.f32.mrb[0].mxu0
        %v1376 = vadd.f32 %v1023, %v1375
        %1377 = vmatprep.mubr.f32.mxu0 %v639
        %1378 = vmatmul.mubr.f32.gmra.mrb[0].mxu0 %v638
        %v1379 = vpop.f32.mrb[0].mxu0
        %v1380 = vadd.f32 %v1027, %v1379
        %v1381 = vpop.f32.mrb[0].mxu0
        %v1382 = vadd.f32 %v1029, %v1381
        %1383 = vmatprep.mubr.f32.mxu0 %v643
        %1384 = vmatmul.mubr.f32.gmra.mrb[0].mxu0 %v642
        %v1385 = vpop.f32.mrb[0].mxu0
        %v1386 = vadd.f32 %v1033, %v1385
        %v1387 = vpop.f32.mrb[0].mxu0
        %v1388 = vadd.f32 %v1035, %v1387
        %1389 = vmatprep.mubr.f32.mxu0 %v647
        %1390 = vmatmul.mubr.f32.gmra.mrb[0].mxu0 %v646
        %v1391 = vpop.f32.mrb[0].mxu0
        %v1392 = vadd.f32 %v1039, %v1391
        %v1393 = vpop.f32.mrb[0].mxu0
        %v1394 = vadd.f32 %v1041, %v1393
        %1395 = vmatprep.mubr.f32.mxu0 %v651
        %1396 = vmatmul.mubr.f32.gmra.mrb[0].mxu0 %v650
        %v1397 = vpop.f32.mrb[0].mxu0
        %v1398 = vadd.f32 %v1045, %v1397
        %v1399 = vpop.f32.mrb[0].mxu0
        %v1400 = vadd.f32 %v1047, %v1399
        %1401 = vmatprep.mubr.f32.mxu0 %v655
        %1402 = vmatmul.mubr.f32.gmra.mrb[0].mxu0 %v654
        %v1403 = vpop.f32.mrb[0].mxu0
        %v1404 = vadd.f32 %v1051, %v1403
        %v1405 = vpop.f32.mrb[0].mxu0
        %v1406 = vadd.f32 %v1053, %v1405
        %1407 = vmatprep.mubr.f32.mxu0 %v659
        %1408 = vmatmul.mubr.f32.gmra.mrb[0].mxu0 %v658
        %v1409 = vpop.f32.mrb[0].mxu0
        %v1410 = vadd.f32 %v1057, %v1409
        %v1411 = vpop.f32.mrb[0].mxu0
        %v1412 = vadd.f32 %v1059, %v1411
        %1413 = vmatprep.mubr.f32.mxu0 %v663
        %1414 = vmatmul.mubr.f32.gmra.mrb[0].mxu0 %v662
        %v1415 = vpop.f32.mrb[0].mxu0
        %v1416 = vadd.f32 %v1063, %v1415
        %v1417 = vpop.f32.mrb[0].mxu0
        %v1418 = vadd.f32 %v1065, %v1417
        %1419 = vmatprep.mubr.f32.mxu0 %v667
        %1420 = vmatmul.mubr.f32.gmra.mrb[0].mxu0 %v666
        %v1421 = vpop.f32.mrb[0].mxu0
        %v1422 = vadd.f32 %v1069, %v1421
        %v1423 = vpop.f32.mrb[0].mxu0
        %v1424 = vadd.f32 %v1071, %v1423
        %1425 = vmatprep.mubr.f32.mxu0 %v671
        %1426 = vmatmul.mubr.f32.gmra.mrb[0].mxu0 %v670
        %v1427 = vpop.f32.mrb[0].mxu0
        %v1428 = vadd.f32 %v1075, %v1427
        %v1429 = vpop.f32.mrb[0].mxu0
        %v1430 = vadd.f32 %v1077, %v1429
        %1431 = vmatprep.mubr.f32.mxu0 %v675
        %1432 = vmatmul.mubr.f32.gmra.mrb[0].mxu0 %v674
        %v1433 = vpop.f32.mrb[0].mxu0
        %v1434 = vadd.f32 %v1081, %v1433
        %v1435 = vpop.f32.mrb[0].mxu0
        %v1436 = vadd.f32 %v1083, %v1435
        %1437 = vmatprep.mubr.f32.mxu0 %v679
        %1438 = vmatmul.mubr.f32.gmra.mrb[0].mxu0 %v678
        %v1439 = vpop.f32.mrb[0].mxu0
        %v1440 = vadd.f32 %v1087, %v1439
        %v1441 = vpop.f32.mrb[0].mxu0
        %v1442 = vadd.f32 %v1089, %v1441
        %1443 = vmatprep.mubr.f32.mxu0 %v683
        %1444 = vmatmul.mubr.f32.gmra.mrb[0].mxu0 %v682
        %v1445 = vpop.f32.mrb[0].mxu0
        %v1446 = vadd.f32 %v1093, %v1445
        %v1447 = vpop.f32.mrb[0].mxu0
        %v1448 = vadd.f32 %v1095, %v1447
        %1449 = vmatprep.mubr.f32.mxu0 %v687
        %1450 = vmatmul.mubr.f32.gmra.mrb[0].mxu0 %v686
        %v1451 = vpop.f32.mrb[0].mxu0
        %v1452 = vadd.f32 %v1099, %v1451
        %v1453 = vpop.f32.mrb[0].mxu0
        %v1454 = vadd.f32 %v1101, %v1453
        %1455 = vmatprep.mubr.f32.mxu0 %v691
        %1456 = vmatmul.mubr.f32.gmra.mrb[0].mxu0 %v690
        %v1457 = vpop.f32.mrb[0].mxu0
        %v1458 = vadd.f32 %v1105, %v1457
        %v1459 = vpop.f32.mrb[0].mxu0
        %v1460 = vadd.f32 %v1107, %v1459
        %1461 = vmatprep.mubr.f32.mxu0 %v695
        %1462 = vmatmul.mubr.f32.gmra.mrb[0].mxu0 %v694
        %v1463 = vpop.f32.mrb[0].mxu0
        %v1464 = vadd.f32 %v1111, %v1463
        %v1465 = vpop.f32.mrb[0].mxu0
        %v1466 = vadd.f32 %v1113, %v1465
        %1467 = vmatprep.mubr.f32.mxu0 %v699
        %1468 = vmatmul.mubr.f32.gmra.mrb[0].mxu0 %v698
        %v1469 = vpop.f32.mrb[0].mxu0
        %v1470 = vadd.f32 %v1117, %v1469
        %v1471 = vpop.f32.mrb[0].mxu0
        %v1472 = vadd.f32 %v1119, %v1471
        %1473 = vmatprep.mubr.f32.mxu0 %v703
        %1474 = vmatmul.mubr.f32.gmra.mrb[0].mxu0 %v702
        %v1475 = vpop.f32.mrb[0].mxu0
        %v1476 = vadd.f32 %v1123, %v1475
        %v1477 = vpop.f32.mrb[0].mxu0
        %v1478 = vadd.f32 %v1125, %v1477
        %1479 = vmatprep.mubr.f32.mxu0 %v707
        %1480 = vmatmul.mubr.f32.gmra.mrb[0].mxu0 %v706
        %v1481 = vpop.f32.mrb[0].mxu0
        %v1482 = vadd.f32 %v1129, %v1481
        %v1483 = vpop.f32.mrb[0].mxu0
        %v1484 = vadd.f32 %v1131, %v1483
        %1485 = vmatprep.mubr.f32.mxu0 %v711
        %1486 = vmatmul.mubr.f32.gmra.mrb[0].mxu0 %v710
        %v1487 = vpop.f32.mrb[0].mxu0
        %v1488 = vadd.f32 %v1135, %v1487
        %v1489 = vpop.f32.mrb[0].mxu0
        %v1490 = vadd.f32 %v1137, %v1489
        %1491 = vmatprep.mubr.f32.mxu0 %v715
        %1492 = vmatmul.mubr.f32.gmra.mrb[0].mxu0 %v714
        %v1493 = vpop.f32.mrb[0].mxu0
        %v1494 = vadd.f32 %v1141, %v1493
        %v1495 = vpop.f32.mrb[0].mxu0
        %v1496 = vadd.f32 %v1143, %v1495
        %1497 = vmatprep.mubr.f32.mxu0 %v719
        %1498 = vmatmul.mubr.f32.gmra.mrb[0].mxu0 %v718
        %v1499 = vpop.f32.mrb[0].mxu0
        %v1500 = vadd.f32 %v1147, %v1499
        %v1501 = vpop.f32.mrb[0].mxu0
        %v1502 = vadd.f32 %v1149, %v1501
        %1503 = vmatprep.mubr.f32.mxu0 %v723
        %1504 = vmatmul.mubr.f32.gmra.mrb[0].mxu0 %v722
        %v1505 = vpop.f32.mrb[0].mxu0
        %v1506 = vadd.f32 %v1153, %v1505
        %v1507 = vpop.f32.mrb[0].mxu0
        %v1508 = vadd.f32 %v1155, %v1507
        %1509 = vmatprep.mubr.f32.mxu0 %v727
        %1510 = vmatmul.mubr.f32.gmra.mrb[0].mxu0 %v726
        %v1511 = vpop.f32.mrb[0].mxu0
        %v1512 = vadd.f32 %v1159, %v1511
        %v1513 = vpop.f32.mrb[0].mxu0
        %v1514 = vadd.f32 %v1161, %v1513
        %1515 = vmatprep.mubr.f32.mxu0 %v731
        %1516 = vmatmul.mubr.f32.gmra.mrb[0].mxu0 %v730
        %v1517 = vpop.f32.mrb[0].mxu0
        %v1518 = vadd.f32 %v1165, %v1517
        %v1519 = vpop.f32.mrb[0].mxu0
        %v1520 = vadd.f32 %v1167, %v1519
        %1521 = vmatprep.mubr.f32.mxu0 %v735
        %1522 = vmatmul.mubr.f32.gmra.mrb[0].mxu0 %v734
        %v1523 = vpop.f32.mrb[0].mxu0
        %v1524 = vadd.f32 %v1171, %v1523
        %v1525 = vpop.f32.mrb[0].mxu0
        %v1526 = vadd.f32 %v1173, %v1525
        %1527 = vmatprep.mubr.f32.mxu0 %v739
        %1528 = vmatmul.mubr.f32.gmra.mrb[0].mxu0 %v738
        %v1529 = vpop.f32.mrb[0].mxu0
        %v1530 = vadd.f32 %v1177, %v1529
        %v1531 = vpop.f32.mrb[0].mxu0
        %v1532 = vadd.f32 %v1179, %v1531
        %1533 = vmatprep.mubr.f32.mxu0 %v743
        %1534 = vmatmul.mubr.f32.gmra.mrb[0].mxu0 %v742
        %v1535 = vpop.f32.mrb[0].mxu0
        %v1536 = vadd.f32 %v1183, %v1535
        %v1537 = vpop.f32.mrb[0].mxu0
        %v1538 = vadd.f32 %v1185, %v1537
        %1539 = vmatprep.mubr.f32.mxu0 %v747
        %1540 = vmatmul.mubr.f32.gmra.mrb[0].mxu0 %v746
        %v1541 = vpop.f32.mrb[0].mxu0
        %v1542 = vadd.f32 %v1189, %v1541
        %v1543 = vpop.f32.mrb[0].mxu0
        %v1544 = vadd.f32 %v1191, %v1543
        %1545 = vmatprep.mubr.f32.mxu0 %v751
        %1546 = vmatmul.mubr.f32.gmra.mrb[0].mxu0 %v750
        %v1547 = vpop.f32.mrb[0].mxu0
        %v1548 = vadd.f32 %v1195, %v1547
        %v1549 = vpop.f32.mrb[0].mxu0
        %v1550 = vadd.f32 %v1197, %v1549
        %1551 = vmatprep.mubr.f32.mxu0 %v755
        %1552 = vmatmul.mubr.f32.gmra.mrb[0].mxu0 %v754
        %v1553 = vpop.f32.mrb[0].mxu0
        %v1554 = vadd.f32 %v1201, %v1553
        %v1555 = vpop.f32.mrb[0].mxu0
        %v1556 = vadd.f32 %v1203, %v1555
        %1557 = vmatprep.mubr.f32.mxu0 %v759
        %1558 = vmatmul.mubr.f32.gmra.mrb[0].mxu0 %v758
        %v1559 = vpop.f32.mrb[0].mxu0
        %v1560 = vadd.f32 %v1207, %v1559
        %v1561 = vpop.f32.mrb[0].mxu0
        %v1562 = vadd.f32 %v1209, %v1561
        %1563 = vmatprep.mubr.f32.mxu0 %v763
        %1564 = vmatmul.mubr.f32.gmra.mrb[0].mxu0 %v762
        %v1565 = vpop.f32.mrb[0].mxu0
        %v1566 = vadd.f32 %v1213, %v1565
        %v1567 = vpop.f32.mrb[0].mxu0
        %v1568 = vadd.f32 %v1215, %v1567
        %1569 = vmatprep.mubr.f32.mxu0 %v767
        %1570 = vmatmul.mubr.f32.gmra.mrb[0].mxu0 %v766
        %v1571 = vpop.f32.mrb[0].mxu0
        %v1572 = vadd.f32 %v1219, %v1571
        %v1573 = vpop.f32.mrb[0].mxu0
        %v1574 = vadd.f32 %v1221, %v1573
        %1575 = vmatprep.mubr.f32.mxu0 %v771
        %1576 = vmatmul.mubr.f32.gmra.mrb[0].mxu0 %v770
        %v1577 = vpop.f32.mrb[0].mxu0
        %v1578 = vadd.f32 %v1225, %v1577
        %v1579 = vpop.f32.mrb[0].mxu0
        %v1580 = vadd.f32 %v1227, %v1579
        %1581 = vmatprep.mubr.f32.mxu0 %v775
        %1582 = vmatmul.mubr.f32.gmra.mrb[0].mxu0 %v774
        %v1583 = vpop.f32.mrb[0].mxu0
        %v1584 = vadd.f32 %v1231, %v1583
        %v1585 = vpop.f32.mrb[0].mxu0
        %v1586 = vadd.f32 %v1233, %v1585
        %1587 = vmatprep.mubr.f32.mxu0 %v779
        %1588 = vmatmul.mubr.f32.gmra.mrb[0].mxu0 %v778
        %v1589 = vpop.f32.mrb[0].mxu0
        %v1590 = vadd.f32 %v1237, %v1589
        %v1591 = vpop.f32.mrb[0].mxu0
        %v1592 = vadd.f32 %v1239, %v1591
        %1593 = vmatprep.mubr.f32.mxu0 %v783
        %1594 = vmatmul.mubr.f32.gmra.mrb[0].mxu0 %v782
        %v1595 = vpop.f32.mrb[0].mxu0
        %v1596 = vadd.f32 %v1243, %v1595
        %v1597 = vpop.f32.mrb[0].mxu0
        %v1598 = vadd.f32 %v1245, %v1597
        %1599 = vmatprep.mubr.f32.mxu0 %v787
        %1600 = vmatmul.mubr.f32.gmra.mrb[0].mxu0 %v786
        %v1601 = vpop.f32.mrb[0].mxu0
        %v1602 = vadd.f32 %v1249, %v1601
        %v1603 = vpop.f32.mrb[0].mxu0
        %v1604 = vadd.f32 %v1251, %v1603
        %1605 = vmatprep.mubr.f32.mxu0 %v791
        %1606 = vmatmul.mubr.f32.gmra.mrb[0].mxu0 %v790
        %v1607 = vpop.f32.mrb[0].mxu0
        %v1608 = vadd.f32 %v1255, %v1607
        %v1609 = vpop.f32.mrb[0].mxu0
        %v1610 = vadd.f32 %v1257, %v1609
        %1611 = vmatprep.mubr.f32.mxu0 %v795
        %1612 = vmatmul.mubr.f32.gmra.mrb[0].mxu0 %v794
        %v1613 = vpop.f32.mrb[0].mxu0
        %v1614 = vadd.f32 %v1261, %v1613
        %v1615 = vpop.f32.mrb[0].mxu0
        %v1616 = vadd.f32 %v1263, %v1615
        %1617 = vmatprep.mubr.f32.mxu0 %v799
        %1618 = vmatmul.mubr.f32.gmra.mrb[0].mxu0 %v798
        %v1619 = vpop.f32.mrb[0].mxu0
        %v1620 = vadd.f32 %v1267, %v1619
        %v1621 = vpop.f32.mrb[0].mxu0
        %v1622 = vadd.f32 %v1269, %v1621
        %1623 = vmatprep.mubr.f32.mxu0 %v803
        %1624 = vmatmul.mubr.f32.gmra.mrb[0].mxu0 %v802
        %v1625 = vpop.f32.mrb[0].mxu0
        %v1626 = vadd.f32 %v1273, %v1625
        %v1627 = vpop.f32.mrb[0].mxu0
        %v1628 = vadd.f32 %v1275, %v1627
        %1629 = vmatprep.mubr.f32.mxu0 %v807
        %1630 = vmatmul.mubr.f32.gmra.mrb[0].mxu0 %v806
        %v1631 = vpop.f32.mrb[0].mxu0
        %v1632 = vadd.f32 %v1279, %v1631
        %v1633 = vpop.f32.mrb[0].mxu0
        %v1634 = vadd.f32 %v1281, %v1633
        %1635 = vmatprep.mubr.f32.mxu0 %v811
        %1636 = vmatmul.mubr.f32.gmra.mrb[0].mxu0 %v810
        %v1637 = vpop.f32.mrb[0].mxu0
        %v1638 = vadd.f32 %v1285, %v1637
        %v1639 = vpop.f32.mrb[0].mxu0
        %v1640 = vadd.f32 %v1287, %v1639
        %1641 = vmatprep.mubr.f32.mxu0 %v815
        %1642 = vmatmul.mubr.f32.gmra.mrb[0].mxu0 %v814
        %v1643 = vpop.f32.mrb[0].mxu0
        %v1644 = vadd.f32 %v1291, %v1643
        %v1645 = vpop.f32.mrb[0].mxu0
        %v1646 = vadd.f32 %v1293, %v1645
        %1647 = vmatprep.mubr.f32.mxu0 %v819
        %1648 = vmatmul.mubr.f32.gmra.mrb[0].mxu0 %v818
        %v1649 = vpop.f32.mrb[0].mxu0
        %v1650 = vadd.f32 %v1297, %v1649
        %v1651 = vpop.f32.mrb[0].mxu0
        %v1652 = vadd.f32 %v1299, %v1651
        %1653 = vdwg.mxu0
        %v1654 = vadd.f32 %v532, %v1368
        %v1655 = vadd.f32 %v533, %v1370
        %v1656 = vadd.f32 %v534, %v1374
        %v1657 = vadd.f32 %v535, %v1376
        %v1658 = vadd.f32 %v536, %v1380
        %v1659 = vadd.f32 %v537, %v1382
        %v1660 = vadd.f32 %v538, %v1386
        %v1661 = vadd.f32 %v539, %v1388
        %v1662 = vadd.f32 %v540, %v1392
        %v1663 = vadd.f32 %v541, %v1394
        %v1664 = vadd.f32 %v542, %v1398
        %v1665 = vadd.f32 %v543, %v1400
        %v1666 = vadd.f32 %v544, %v1404
        %v1667 = vadd.f32 %v545, %v1406
        %v1668 = vadd.f32 %v546, %v1410
        %v1669 = vadd.f32 %v547, %v1412
        %v1670 = vadd.f32 %v548, %v1416
        %v1671 = vadd.f32 %v549, %v1418
        %v1672 = vadd.f32 %v550, %v1422
        %v1673 = vadd.f32 %v551, %v1424
        %v1674 = vadd.f32 %v552, %v1428
        %v1675 = vadd.f32 %v553, %v1430
        %v1676 = vadd.f32 %v554, %v1434
        %v1677 = vadd.f32 %v555, %v1436
        %v1678 = vadd.f32 %v556, %v1440
        %v1679 = vadd.f32 %v557, %v1442
        %v1680 = vadd.f32 %v558, %v1446
        %v1681 = vadd.f32 %v559, %v1448
        %v1682 = vadd.f32 %v560, %v1452
        %v1683 = vadd.f32 %v561, %v1454
        %v1684 = vadd.f32 %v562, %v1458
        %v1685 = vadd.f32 %v563, %v1460
        %v1686 = vadd.f32 %v564, %v1464
        %v1687 = vadd.f32 %v565, %v1466
        %v1688 = vadd.f32 %v566, %v1470
        %v1689 = vadd.f32 %v567, %v1472
        %v1690 = vadd.f32 %v568, %v1476
        %v1691 = vadd.f32 %v569, %v1478
        %v1692 = vadd.f32 %v570, %v1482
        %v1693 = vadd.f32 %v571, %v1484
        %v1694 = vadd.f32 %v572, %v1488
        %v1695 = vadd.f32 %v573, %v1490
        %v1696 = vadd.f32 %v574, %v1494
        %v1697 = vadd.f32 %v575, %v1496
        %v1698 = vadd.f32 %v576, %v1500
        %v1699 = vadd.f32 %v577, %v1502
        %v1700 = vadd.f32 %v578, %v1506
        %v1701 = vadd.f32 %v579, %v1508
        %v1702 = vadd.f32 %v580, %v1512
        %v1703 = vadd.f32 %v581, %v1514
        %v1704 = vadd.f32 %v582, %v1518
        %v1705 = vadd.f32 %v583, %v1520
        %v1706 = vadd.f32 %v584, %v1524
        %v1707 = vadd.f32 %v585, %v1526
        %v1708 = vadd.f32 %v586, %v1530
        %v1709 = vadd.f32 %v587, %v1532
        %v1710 = vadd.f32 %v588, %v1536
        %v1711 = vadd.f32 %v589, %v1538
        %v1712 = vadd.f32 %v590, %v1542
        %v1713 = vadd.f32 %v591, %v1544
        %v1714 = vadd.f32 %v592, %v1548
        %v1715 = vadd.f32 %v593, %v1550
        %v1716 = vadd.f32 %v594, %v1554
        %v1717 = vadd.f32 %v595, %v1556
        %v1718 = vadd.f32 %v596, %v1560
        %v1719 = vadd.f32 %v597, %v1562
        %v1720 = vadd.f32 %v598, %v1566
        %v1721 = vadd.f32 %v599, %v1568
        %v1722 = vadd.f32 %v600, %v1572
        %v1723 = vadd.f32 %v601, %v1574
        %v1724 = vadd.f32 %v602, %v1578
        %v1725 = vadd.f32 %v603, %v1580
        %v1726 = vadd.f32 %v604, %v1584
        %v1727 = vadd.f32 %v605, %v1586
        %v1728 = vadd.f32 %v606, %v1590
        %v1729 = vadd.f32 %v607, %v1592
        %v1730 = vadd.f32 %v608, %v1596
        %v1731 = vadd.f32 %v609, %v1598
        %v1732 = vadd.f32 %v610, %v1602
        %v1733 = vadd.f32 %v611, %v1604
        %v1734 = vadd.f32 %v612, %v1608
        %v1735 = vadd.f32 %v613, %v1610
        %v1736 = vadd.f32 %v614, %v1614
        %v1737 = vadd.f32 %v615, %v1616
        %v1738 = vadd.f32 %v616, %v1620
        %v1739 = vadd.f32 %v617, %v1622
        %v1740 = vadd.f32 %v618, %v1626
        %v1741 = vadd.f32 %v619, %v1628
        %v1742 = vadd.f32 %v620, %v1632
        %v1743 = vadd.f32 %v621, %v1634
        %v1744 = vadd.f32 %v622, %v1638
        %v1745 = vadd.f32 %v623, %v1640
        %v1746 = vadd.f32 %v624, %v1644
        %v1747 = vadd.f32 %v625, %v1646
        %v1748 = vadd.f32 %v626, %v1650
        %v1749 = vadd.f32 %v627, %v1652
        %1750 = vst [vmem:[%s315] sm:$0xff] %v1654
        %1751 = vst [vmem:[%s315 + $0x8] sm:$0xff] %v1655
        %1752 = vst [vmem:[%s315 + $0x10] sm:$0xff] %v1656
        %1753 = vst [vmem:[%s315 + $0x18] sm:$0xff] %v1657
        %1754 = vst [vmem:[%s315 + $0x20] sm:$0xff] %v1658
        %1755 = vst [vmem:[%s315 + $0x28] sm:$0xff] %v1659
        %1756 = vst [vmem:[%s315 + $0x30] sm:$0xff] %v1660
        %1757 = vst [vmem:[%s315 + $0x38] sm:$0xff] %v1661
        %1758 = vst [vmem:[%s315 + $0x40] sm:$0xff] %v1662
        %1759 = vst [vmem:[%s315 + $0x48] sm:$0xff] %v1663
        %1760 = vst [vmem:[%s315 + $0x50] sm:$0xff] %v1664
        %1761 = vst [vmem:[%s315 + $0x58] sm:$0xff] %v1665
        %1762 = vst [vmem:[%s315 + $0x60] sm:$0xff] %v1666
        %1763 = vst [vmem:[%s315 + $0x68] sm:$0xff] %v1667
        %1764 = vst [vmem:[%s315 + $0x70] sm:$0xff] %v1668
        %1765 = vst [vmem:[%s315 + $0x78] sm:$0xff] %v1669
        %1766 = vst [vmem:[%s315 + $0x80] sm:$0xff] %v1670
        %1767 = vst [vmem:[%s315 + $0x88] sm:$0xff] %v1671
        %1768 = vst [vmem:[%s315 + $0x90] sm:$0xff] %v1672
        %1769 = vst [vmem:[%s315 + $0x98] sm:$0xff] %v1673
        %1770 = vst [vmem:[%s315 + $0xa0] sm:$0xff] %v1674
        %1771 = vst [vmem:[%s315 + $0xa8] sm:$0xff] %v1675
        %1772 = vst [vmem:[%s315 + $0xb0] sm:$0xff] %v1676
        %1773 = vst [vmem:[%s315 + $0xb8] sm:$0xff] %v1677
        %1774 = vst [vmem:[%s315 + $0xc0] sm:$0xff] %v1678
        %1775 = vst [vmem:[%s315 + $0xc8] sm:$0xff] %v1679
        %1776 = vst [vmem:[%s315 + $0xd0] sm:$0xff] %v1680
        %1777 = vst [vmem:[%s315 + $0xd8] sm:$0xff] %v1681
        %1778 = vst [vmem:[%s315 + $0xe0] sm:$0xff] %v1682
        %1779 = vst [vmem:[%s315 + $0xe8] sm:$0xff] %v1683
        %1780 = vst [vmem:[%s315 + $0xf0] sm:$0xff] %v1684
        %1781 = vst [vmem:[%s315 + $0xf8] sm:$0xff] %v1685
        %1782 = vst [vmem:[%s315 + $0x100] sm:$0xff] %v1686
        %1783 = vst [vmem:[%s315 + $0x108] sm:$0xff] %v1687
        %1784 = vst [vmem:[%s315 + $0x110] sm:$0xff] %v1688
        %1785 = vst [vmem:[%s315 + $0x118] sm:$0xff] %v1689
        %1786 = vst [vmem:[%s315 + $0x120] sm:$0xff] %v1690
        %1787 = vst [vmem:[%s315 + $0x128] sm:$0xff] %v1691
        %1788 = vst [vmem:[%s315 + $0x130] sm:$0xff] %v1692
        %1789 = vst [vmem:[%s315 + $0x138] sm:$0xff] %v1693
        %1790 = vst [vmem:[%s315 + $0x140] sm:$0xff] %v1694
        %1791 = vst [vmem:[%s315 + $0x148] sm:$0xff] %v1695
        %1792 = vst [vmem:[%s315 + $0x150] sm:$0xff] %v1696
        %1793 = vst [vmem:[%s315 + $0x158] sm:$0xff] %v1697
        %1794 = vst [vmem:[%s315 + $0x160] sm:$0xff] %v1698
        %1795 = vst [vmem:[%s315 + $0x168] sm:$0xff] %v1699
        %1796 = vst [vmem:[%s315 + $0x170] sm:$0xff] %v1700
        %1797 = vst [vmem:[%s315 + $0x178] sm:$0xff] %v1701
        %1798 = vst [vmem:[%s315 + $0x180] sm:$0xff] %v1702
        %1799 = vst [vmem:[%s315 + $0x188] sm:$0xff] %v1703
        %1800 = vst [vmem:[%s315 + $0x190] sm:$0xff] %v1704
        %1801 = vst [vmem:[%s315 + $0x198] sm:$0xff] %v1705
        %1802 = vst [vmem:[%s315 + $0x1a0] sm:$0xff] %v1706
        %1803 = vst [vmem:[%s315 + $0x1a8] sm:$0xff] %v1707
        %1804 = vst [vmem:[%s315 + $0x1b0] sm:$0xff] %v1708
        %1805 = vst [vmem:[%s315 + $0x1b8] sm:$0xff] %v1709
        %1806 = vst [vmem:[%s315 + $0x1c0] sm:$0xff] %v1710
        %1807 = vst [vmem:[%s315 + $0x1c8] sm:$0xff] %v1711
        %1808 = vst [vmem:[%s315 + $0x1d0] sm:$0xff] %v1712
        %1809 = vst [vmem:[%s315 + $0x1d8] sm:$0xff] %v1713
        %1810 = vst [vmem:[%s315 + $0x1e0] sm:$0xff] %v1714
        %1811 = vst [vmem:[%s315 + $0x1e8] sm:$0xff] %v1715
        %1812 = vst [vmem:[%s315 + $0x1f0] sm:$0xff] %v1716
        %1813 = vst [vmem:[%s315 + $0x1f8] sm:$0xff] %v1717
        %1814 = vst [vmem:[%s315 + $0x200] sm:$0xff] %v1718
        %1815 = vst [vmem:[%s315 + $0x208] sm:$0xff] %v1719
        %1816 = vst [vmem:[%s315 + $0x210] sm:$0xff] %v1720
        %1817 = vst [vmem:[%s315 + $0x218] sm:$0xff] %v1721
        %1818 = vst [vmem:[%s315 + $0x220] sm:$0xff] %v1722
        %1819 = vst [vmem:[%s315 + $0x228] sm:$0xff] %v1723
        %1820 = vst [vmem:[%s315 + $0x230] sm:$0xff] %v1724
        %1821 = vst [vmem:[%s315 + $0x238] sm:$0xff] %v1725
        %1822 = vst [vmem:[%s315 + $0x240] sm:$0xff] %v1726
        %1823 = vst [vmem:[%s315 + $0x248] sm:$0xff] %v1727
        %1824 = vst [vmem:[%s315 + $0x250] sm:$0xff] %v1728
        %1825 = vst [vmem:[%s315 + $0x258] sm:$0xff] %v1729
        %1826 = vst [vmem:[%s315 + $0x260] sm:$0xff] %v1730
        %1827 = vst [vmem:[%s315 + $0x268] sm:$0xff] %v1731
        %1828 = vst [vmem:[%s315 + $0x270] sm:$0xff] %v1732
        %1829 = vst [vmem:[%s315 + $0x278] sm:$0xff] %v1733
        %1830 = vst [vmem:[%s315 + $0x280] sm:$0xff] %v1734
        %1831 = vst [vmem:[%s315 + $0x288] sm:$0xff] %v1735
        %1832 = vst [vmem:[%s315 + $0x290] sm:$0xff] %v1736
        %1833 = vst [vmem:[%s315 + $0x298] sm:$0xff] %v1737
        %1834 = vst [vmem:[%s315 + $0x2a0] sm:$0xff] %v1738
        %1835 = vst [vmem:[%s315 + $0x2a8] sm:$0xff] %v1739
        %1836 = vst [vmem:[%s315 + $0x2b0] sm:$0xff] %v1740
        %1837 = vst [vmem:[%s315 + $0x2b8] sm:$0xff] %v1741
        %1838 = vst [vmem:[%s315 + $0x2c0] sm:$0xff] %v1742
        %1839 = vst [vmem:[%s315 + $0x2c8] sm:$0xff] %v1743
        %1840 = vst [vmem:[%s315 + $0x2d0] sm:$0xff] %v1744
        %1841 = vst [vmem:[%s315 + $0x2d8] sm:$0xff] %v1745
        %1842 = vst [vmem:[%s315 + $0x2e0] sm:$0xff] %v1746
        %1843 = vst [vmem:[%s315 + $0x2e8] sm:$0xff] %v1747
        %1844 = vst [vmem:[%s315 + $0x2f0] sm:$0xff] %v1748
        %1845 = vst [vmem:[%s315 + $0x2f8] sm:$0xff] %v1749
        %s1846 = sand.u32 %s136, 1
        %s1847 = scalar_lea.sflag [#allocation4], %s1846
        %s1848 = sand.u32 %s136, 1
        %s1849 = smul.addr %s1848, 768
        %s1850 = scalar_lea.vmem [#allocation8], %s1849
        // Predicated region
        $region49: #{tpu_custom_call.1} parent=31 // pred_check
          %p1851 = pneg %p146
        $region50: #{tpu_custom_call.1} parent=31 // pred_check_branch
          %1853 = sbr.rel (%p1851) target = $region52
        $region51: #{tpu_custom_call.1} parent=31 // pred_region
          %s1854 = smul.u32 48, %s28
          %s1855 = smul.u32 2, %s29
          %s1856 = ssub.s32 3, %s1855
          %p1857 = scmp.lt.s32.totalorder %s1856, 2
          %s1858 = scalar_select %p1857, %s1856, 2
          %s1859 = smul.u32 6144, %s1858
          %s1861 = ssub.s32 12288, %s1859
          %1862 = vsyncadd %s1847, %s1861
          %p1863 = scmp.ne.s32.totalorder 0, %s1859
          %s1864 = smul.addr %s1854, 3
          %s1865 = sadd.s32 %s1855, %s1864
          %s1866 = smul.addr %s1865, 128
          %s1867 = scalar_lea.hbm %s3, %s1866
          %s1868 = smul.u32 %s1858, 8
          %s1869 = smul.u32 %s1868, 48
          %s1870 = sshll.u32 %s1850, 4
          %s1871 = int_to_ptr.vmem [resolvable:$true] %s1870
          %s1872 = sshll.u32 %s1869, 4
          %1876 = dma.vmem_to_hbm [thread:$0]  (%p1863), %s1871, %s1872, %s1867, %s1847, 256, 384, %s1868
        $region52: #{tpu_custom_call.1} parent=31 // pred_fallthru
          _
      $region32: #{tpu_custom_call.1} parent=5 // pred_fallthru
        _
      %p1877 = scmp.le.s32.totalorder 2, %s18
      // Predicated region
      $region53: #{tpu_custom_call.1} parent=5 // pred_check
        %p1878 = pneg %p1877
      $region54: #{tpu_custom_call.1} parent=5 // pred_check_branch
        %1880 = sbr.rel (%p1878) target = $region56
      $region55: #{tpu_custom_call.1} parent=5 // pred_region
        %s1881 = ssub.s32 %s18, 2
        // Predicated region
        $region57: #{tpu_custom_call.1} parent=55 // pred_check
          %p1882 = pneg %p152
        $region58: #{tpu_custom_call.1} parent=55 // pred_check_branch
          %1884 = sbr.rel (%p1882) target = $region60
        $region59: #{tpu_custom_call.1} parent=55 // pred_region
          %s1885 = sand.u32 %s137, 1
          %s1886 = scalar_lea.sflag [#allocation4], %s1885
          %s1887 = sand.u32 %s137, 1
          %s1888 = smul.addr %s1887, 768
          %s1889 = scalar_lea.vmem [#allocation8], %s1888
          %1890 = dma.done %s1886, 12288
        $region60: #{tpu_custom_call.1} parent=55 // pred_fallthru
          _
      $region56: #{tpu_custom_call.1} parent=5 // pred_fallthru
        _
    $region6: #{tpu_custom_call.1} parent=1 // loop_footer
      %s22 = sadd.s32 1, %s18
    $region7: #{tpu_custom_call.1} parent=1 // loop_footer_branch
      %17 = sbr.rel target = $region3
    $region8: #{tpu_custom_call.1} parent=1 // loop_exit
      _
    %1891 = vsyncpa [#allocation3], 1
    %s1892 = scalar_lea.sflag [#allocation3], 1
    %1893 = vsyncpa %s1892, 1
    %1894 = vsyncpa [#allocation6], 1
    %s1895 = scalar_lea.sflag [#allocation6], 1
    %1896 = vsyncpa %s1895, 1
    %1897 = vsyncpa [#allocation4], 1
    %s1898 = scalar_lea.sflag [#allocation4], 1
    %1899 = vsyncpa %s1898, 1

</llo_original>
